<compile_context>
chip_gen: v7x
topology: tpu7x:2x2x1
jax: 0.10.0
libtpu: 0.0.40
codegen_flags: <defaults>
</compile_context>

<pallas_src>
import jax
import jax.numpy as jnp
import numpy as np
from jax import lax
from jax.experimental import pallas as pl
from jax.experimental.pallas import tpu as pltpu


def make_kernel(C, L, K, N, Bblk, P):
    lpad = L + 2 * P          # per-sample padded segment length (8-aligned)
    R = Bblk * lpad           # resident "sample region" lane width
    T = R + 2 * P             # + guard columns so shifted reads stay in bounds

    def kernel(x_ref, w0_ref, b0_ref, wA_ref, bA_ref, wB_ref, bB_ref, scal_ref,
               wfc_ref, bfc_ref, out_ref, hpad_ref, ybuf_ref):
        # ---- interior masks (float): 1.0 on real time steps, 0.0 on pad ----
        cols = lax.broadcasted_iota(jnp.int32, (1, T), 1)
        interior = None
        for b in range(Bblk):
            s = P + b * lpad + P                     # interior start (8-aligned)
            w = jnp.logical_and(cols >= s, cols < s + L)
            interior = w if interior is None else jnp.logical_or(interior, w)
        mask_t = jnp.where(interior, 1.0, 0.0)       # [1, T]
        mask_r = mask_t[:, P:P + R]                  # [1, R]

        # ---- stem 1x1 conv (1 -> C): ONE masked full-buffer store.  The pad
        # margins / guard columns are zeroed here, once, and never written
        # again (per-layer updates only rewrite the interior-masked region). --
        x_row = x_ref[0]                                               # [1, T]
        hpad_ref[...] = (w0_ref[...] * x_row + b0_ref[...]) * mask_t   # [C, T]

        skip_sum = jnp.zeros((1, R), jnp.float32)

        # ---- N dilated gated layers (dilation 1, 2, 4, ...) -----------------
        # TODO(synk): at real N/K use lax.fori_loop + an SMEM offset table
        # instead of full Python unrolling.
        for i in range(N):
            d = 2 ** i
            pad = d * (K - 1) // 2

            # dilated conv: K accumulating matmuls over shifted READS of the
            # resident padded buffer (no shifted-copy stores, no sbuf scratch)
            conv = bA_ref[i]                                   # [C, 1] (broadcasts)
            for j in range(K):
                off = j * d - pad                              # static, |off| <= P
                tap = hpad_ref[:, P + off:P + off + R]         # [C, R]
                conv = conv + jnp.dot(wA_ref[i * K + j], tap,
                                      preferred_element_type=jnp.float32)

            # gated activation: tanh(x)*sigmoid(x) == (1 - e) / (1 + e*e),
            # e = exp(-x); the clamp keeps e*e finite for very negative inputs.
            e = jnp.exp(-jnp.maximum(conv, -30.0))
            gate = (1.0 - e) * pl.reciprocal(1.0 + e * e, approx=True)  # [C, R]

            # skip 1x1 conv C -> 1: ONE cross-sublane reduce (no channel loop)
            skip = jnp.sum(wB_ref[i] * gate, axis=0, keepdims=True) + bB_ref[i]
            skip = skip * mask_r                               # junk margins -> 0

            # residual, written straight back into the resident padded layout
            hpad_ref[:, P:P + R] = hpad_ref[:, P:P + R] + skip  # broadcast over C
            skip_sum = skip_sum + skip

        # ---- head: relu -> 1x1 conv + relu -> 1x1 conv -> fc -> softmax -----
        w2 = scal_ref[0]
        b2 = scal_ref[1]
        w3 = scal_ref[2]
        b3 = scal_ref[3]
        y = jnp.maximum(skip_sum, 0.0)
        y = jnp.maximum(w2 * y + b2, 0.0)
        y = w3 * y + b3                                         # [1, R]

        # batched FC: stage interiors once, then ONE [Bblk, L] x [L, 256] matmul
        for b in range(Bblk):
            s = b * lpad + P                                    # static, 8-aligned
            ybuf_ref[b:b + 1, :] = y[:, s:s + L]
        logits = jnp.dot(ybuf_ref[...], wfc_ref[...],
                         preferred_element_type=jnp.float32) + bfc_ref[...]

        # softmax with EXACT normalization (approx reciprocal only in the gate)
        m = jnp.max(logits, axis=-1, keepdims=True)
        ez = jnp.exp(logits - m)
        out_ref[0] = ez / jnp.sum(ez, axis=-1, keepdims=True)   # [Bblk, 256]

    return kernel


def wavenet_forward(x, p, *, C, K, N, batch_blocks=1):
    """x: [B, 1, L] float32 (PyTorch NCL layout); p: parameter dict."""
    B, _, L = x.shape
    assert B % batch_blocks == 0, "batch_blocks must divide the batch size"
    G = batch_blocks        # grid steps; keep 1 unless each block is lane-dense
    Bblk = B // G
    padmax = (2 ** (N - 1)) * (K - 1) // 2
    P = max(8, -(-padmax // 8) * 8)   # pad margin, rounded up to 8 lanes
    lpad = L + 2 * P
    R = Bblk * lpad
    T = R + 2 * P

    # Host-side layout prep (plain XLA, negligible):
    #   wB [N,1,C] -> [N,C,1] so the skip projection is a sublane reduce;
    #   bB, w2, b2, w3, b3 -> flat SMEM scalars;
    #   x  [B,1,L] -> zero-padded resident layout [G, 1, T].
    wBt = jnp.transpose(p["wB"], (0, 2, 1))
    bBv = p["bB"].reshape(N).astype(jnp.float32)
    head_scal = jnp.concatenate([p["w2"].reshape(1), p["b2"].reshape(1),
                                 p["w3"].reshape(1), p["b3"].reshape(1)]
                                ).astype(jnp.float32)
    xg = x.reshape(G, Bblk, L)
    xp = jnp.zeros((G, Bblk, lpad), x.dtype).at[:, :, P:P + L].set(xg)
    xp = jnp.pad(xp.reshape(G, 1, R), ((0, 0), (0, 0), (P, P)))   # [G, 1, T]

    # Explicit VMEM budget: double-buffered inputs/outputs + resident scratch.
    def nbytes(a):
        return int(a.size) * a.dtype.itemsize
    io_bytes = sum(nbytes(a) for a in
                   (xp, p["w0"], p["b0"], p["wA"], p["bA"], wBt,
                    p["wfc"], p["bfc"])) + G * Bblk * 256 * 4
    scratch_bytes = (C * T + Bblk * L) * 4
    vmem_limit = int(max(2 * io_bytes + scratch_bytes + (2 << 20), 8 << 20))

    kernel = make_kernel(C, L, K, N, Bblk, P)

    grid_spec = pltpu.PrefetchScalarGridSpec(
        num_scalar_prefetch=0,
        grid=(G,),
        in_specs=[
            pl.BlockSpec((1, 1, T), lambda g: (g, 0, 0)),        # x (padded layout)
            pl.BlockSpec((C, 1), lambda g: (0, 0)),              # w0
            pl.BlockSpec((C, 1), lambda g: (0, 0)),              # b0
            pl.BlockSpec((N * K, C, C), lambda g: (0, 0, 0)),    # wA (per-tap)
            pl.BlockSpec((N, C, 1), lambda g: (0, 0, 0)),        # bA
            pl.BlockSpec((N, C, 1), lambda g: (0, 0, 0)),        # wB^T
            pl.BlockSpec(memory_space=pltpu.MemorySpace.SMEM),   # bB scalars
            pl.BlockSpec(memory_space=pltpu.MemorySpace.SMEM),   # w2,b2,w3,b3
            pl.BlockSpec((L, 256), lambda g: (0, 0)),            # wfc
            pl.BlockSpec((1, 256), lambda g: (0, 0)),            # bfc
        ],
        out_specs=pl.BlockSpec((1, Bblk, 256), lambda g: (g, 0, 0)),
        scratch_shapes=[
            pltpu.VMEM((C, T), jnp.float32),     # resident padded activations
            pltpu.VMEM((Bblk, L), jnp.float32),  # rows for the batched FC
        ],
    )

    out = pl.pallas_call(
        kernel,
        out_shape=jax.ShapeDtypeStruct((G, Bblk, 256), jnp.float32),
        grid_spec=grid_spec,
        compiler_params=pltpu.CompilerParams(
            dimension_semantics=("parallel",),
            vmem_limit_bytes=vmem_limit),
    )(xp, p["w0"], p["b0"], p["wA"], p["bA"], wBt, bBv, head_scal,
      p["wfc"], p["bfc"])
    return out.reshape(B, 256)


def ref_forward(x, p, *, C, K, N):
    """Pure-JAX reference with the exact original math (for correctness check)."""
    B, _, L = x.shape
    h = p["w0"][None] * x + p["b0"][None]                        # [B, C, L]
    skip_sum = jnp.zeros((B, 1, L), jnp.float32)
    for i in range(N):
        d = 2 ** i
        pad = d * (K - 1) // 2
        hp = jnp.pad(h, ((0, 0), (0, 0), (pad, pad)))
        acc = jnp.zeros((B, C, L), jnp.float32)
        for j in range(K):
            acc = acc + jnp.einsum("oc,bcl->bol", p["wA"][i * K + j],
                                   hp[:, :, j * d:j * d + L])
        conv = acc + p["bA"][i][None]
        gate = jnp.tanh(conv) * (1.0 / (1.0 + jnp.exp(-conv)))
        skip = jnp.einsum("oc,bcl->bol", p["wB"][i], gate) + p["bB"][i][None]
        h = h + skip
        skip_sum = skip_sum + skip
    y = jnp.maximum(skip_sum, 0.0)
    y = jnp.maximum(p["w2"] * y + p["b2"], 0.0)
    y = p["w3"] * y + p["b3"]
    y = y.reshape(B, L)
    logits = y @ p["wfc"] + p["bfc"]
    return jax.nn.softmax(logits, axis=-1)


if __name__ == "__main__":
    # Small shapes implied by the module: input [B, 1, L], out_channels=C,
    # kernel_size=K, n dilated layers, Linear(input_shape=L, 256).
    B, C, K, N, L = 2, 4, 3, 3, 16

    key = jax.random.PRNGKey(0)
    ks = jax.random.split(key, 14)
    f32 = jnp.float32
    p = {
        "w0":  0.2 * jax.random.normal(ks[0],  (C, 1), f32),        # Conv1d(1,C,1)
        "b0":  0.1 * jax.random.normal(ks[1],  (C, 1), f32),
        "wA":  0.2 * jax.random.normal(ks[2],  (N * K, C, C), f32), # dilated convs
        "bA":  0.1 * jax.random.normal(ks[3],  (N, C, 1), f32),
        "wB":  0.2 * jax.random.normal(ks[4],  (N, 1, C), f32),     # skip 1x1 convs
        "bB":  0.1 * jax.random.normal(ks[5],  (N, 1, 1), f32),
        "w2":  0.2 * jax.random.normal(ks[6],  (1, 1), f32),        # Conv1d(1,1,1)
        "b2":  0.1 * jax.random.normal(ks[7],  (1, 1), f32),
        "w3":  0.2 * jax.random.normal(ks[8],  (1, 1), f32),        # Conv1d(1,1,1)
        "b3":  0.1 * jax.random.normal(ks[9],  (1, 1), f32),
        "wfc": 0.2 * jax.random.normal(ks[10], (L, 256), f32),      # Linear(L,256).T
        "bfc": 0.1 * jax.random.normal(ks[11], (1, 256), f32),
    }
    x = jax.random.normal(ks[12], (B, 1, L), f32)

    out = wavenet_forward(x, p, C=C, K=K, N=N)   # whole batch in ONE grid step
    out = jax.block_until_ready(out)

    ref = ref_forward(x, p, C=C, K=K, N=N)
    np.testing.assert_allclose(np.asarray(out), np.asarray(ref),
                               rtol=5e-2, atol=5e-3)
    assert out.shape == (B, 256)
    print("KERNEL_OK")
</pallas_src>

<mosaic_0001>
module attributes {stable_mosaic.version = 11 : i64} {
  func.func @kernel(%arg0: i32, %arg1: memref<1x1x80xf32, #tpu.memory_space<vmem>>, %arg2: memref<4x1xf32, #tpu.memory_space<vmem>>, %arg3: memref<4x1xf32, #tpu.memory_space<vmem>>, %arg4: memref<9x4x4xf32, #tpu.memory_space<vmem>>, %arg5: memref<3x4x1xf32, #tpu.memory_space<vmem>>, %arg6: memref<3x4x1xf32, #tpu.memory_space<vmem>>, %arg7: memref<3xf32, #tpu.memory_space<smem>>, %arg8: memref<4xf32, #tpu.memory_space<smem>>, %arg9: memref<16x256xf32, #tpu.memory_space<vmem>>, %arg10: memref<1x256xf32, #tpu.memory_space<vmem>>, %arg11: memref<1x2x256xf32, #tpu.memory_space<vmem>>, %arg12: memref<4x80xf32, #tpu.memory_space<vmem>>, %arg13: memref<2x16xf32, #tpu.memory_space<vmem>>) attributes {dimension_semantics = [#tpu.dimension_semantics<parallel>], iteration_bounds = array<i64: 1>, scalar_prefetch = 0 : i64, scratch_operands = 2 : i64, tpu.core_type = #tpu.core_type<tc>, window_params = [{transform_indices = @transform_0, window_bounds = array<i64: 1, 1, 80>}, {pipeline_mode = #tpu.pipeline_mode<synchronous>, transform_indices = @transform_1, window_bounds = array<i64: 4, 1>}, {pipeline_mode = #tpu.pipeline_mode<synchronous>, transform_indices = @transform_2, window_bounds = array<i64: 4, 1>}, {pipeline_mode = #tpu.pipeline_mode<synchronous>, transform_indices = @transform_3, window_bounds = array<i64: 9, 4, 4>}, {pipeline_mode = #tpu.pipeline_mode<synchronous>, transform_indices = @transform_4, window_bounds = array<i64: 3, 4, 1>}, {pipeline_mode = #tpu.pipeline_mode<synchronous>, transform_indices = @transform_5, window_bounds = array<i64: 3, 4, 1>}, {transform_indices = @transform_6, window_bounds = array<i64: 3>}, {transform_indices = @transform_7, window_bounds = array<i64: 4>}, {pipeline_mode = #tpu.pipeline_mode<synchronous>, transform_indices = @transform_8, window_bounds = array<i64: 16, 256>}, {pipeline_mode = #tpu.pipeline_mode<synchronous>, transform_indices = @transform_9, window_bounds = array<i64: 1, 256>}, {transform_indices = @transform_10, window_bounds = array<i64: 1, 2, 256>}]} {
    %0 = tpu.iota {dimensions = array<i32: 1>} : vector<1x80xi32>
    %c16_i32 = arith.constant 16 : i32
    %1 = vector.broadcast %c16_i32 : i32 to vector<1x80xi32>
    %2 = arith.cmpi sge, %0, %1 : vector<1x80xi32>
    %c32_i32 = arith.constant 32 : i32
    %3 = vector.broadcast %c32_i32 : i32 to vector<1x80xi32>
    %4 = arith.cmpi slt, %0, %3 : vector<1x80xi32>
    %5 = arith.andi %2, %4 : vector<1x80xi1>
    %c48_i32 = arith.constant 48 : i32
    %6 = vector.broadcast %c48_i32 : i32 to vector<1x80xi32>
    %7 = arith.cmpi sge, %0, %6 : vector<1x80xi32>
    %c64_i32 = arith.constant 64 : i32
    %8 = vector.broadcast %c64_i32 : i32 to vector<1x80xi32>
    %9 = arith.cmpi slt, %0, %8 : vector<1x80xi32>
    %10 = arith.andi %7, %9 : vector<1x80xi1>
    %11 = arith.ori %5, %10 : vector<1x80xi1>
    %cst = arith.constant 1.000000e+00 : f32
    %cst_0 = arith.constant 0.000000e+00 : f32
    %12 = vector.broadcast %cst : f32 to vector<1x80xf32>
    %13 = vector.broadcast %cst_0 : f32 to vector<1x80xf32>
    %14 = arith.select %11, %12, %13 : vector<1x80xi1>, vector<1x80xf32>
    %15 = vector.extract_strided_slice %14 {offsets = [0, 8], sizes = [1, 64], strides = [1, 1]} : vector<1x80xf32> to vector<1x64xf32>
    %c0 = arith.constant 0 : index
    %c0_1 = arith.constant 0 : index
    %c0_2 = arith.constant 0 : index
    %16 = vector.load %arg1[%c0, %c0_1, %c0_2] : memref<1x1x80xf32, #tpu.memory_space<vmem>>, vector<1x1x80xf32>
    %17 = vector.shape_cast %16 : vector<1x1x80xf32> to vector<1x80xf32>
    %c0_3 = arith.constant 0 : index
    %c0_4 = arith.constant 0 : index
    %18 = vector.load %arg2[%c0_3, %c0_4] : memref<4x1xf32, #tpu.memory_space<vmem>>, vector<4x1xf32>
    %19 = vector.broadcast %18 : vector<4x1xf32> to vector<4x80xf32>
    %20 = vector.broadcast %17 : vector<1x80xf32> to vector<4x80xf32>
    %21 = arith.mulf %19, %20 : vector<4x80xf32>
    %c0_5 = arith.constant 0 : index
    %c0_6 = arith.constant 0 : index
    %22 = vector.load %arg3[%c0_5, %c0_6] : memref<4x1xf32, #tpu.memory_space<vmem>>, vector<4x1xf32>
    %23 = vector.broadcast %22 : vector<4x1xf32> to vector<4x80xf32>
    %24 = arith.addf %21, %23 : vector<4x80xf32>
    %25 = vector.broadcast %14 : vector<1x80xf32> to vector<4x80xf32>
    %26 = arith.mulf %24, %25 : vector<4x80xf32>
    %c0_7 = arith.constant 0 : index
    %c0_8 = arith.constant 0 : index
    %27 = vector.load %arg12[%c0_7, %c0_8] : memref<4x80xf32, #tpu.memory_space<vmem>>, vector<4x80xf32>
    tpu.vector_store %arg12[%c0_7, %c0_8], %26 {strides = array<i32>} : memref<4x80xf32, #tpu.memory_space<vmem>>, vector<4x80xf32>,
    %cst_9 = arith.constant 0.000000e+00 : f32
    %28 = vector.broadcast %cst_9 : f32 to vector<1x64xf32>
    %c0_10 = arith.constant 0 : index
    %c0_11 = arith.constant 0 : index
    %c0_12 = arith.constant 0 : index
    %29 = vector.load %arg5[%c0_10, %c0_11, %c0_12] : memref<3x4x1xf32, #tpu.memory_space<vmem>>, vector<1x4x1xf32>
    %30 = vector.shape_cast %29 : vector<1x4x1xf32> to vector<4x1xf32>
    %c0_13 = arith.constant 0 : index
    %c7 = arith.constant 7 : index
    %31 = vector.load %arg12[%c0_13, %c7] : memref<4x80xf32, #tpu.memory_space<vmem>>, vector<4x64xf32>
    %c0_14 = arith.constant 0 : index
    %c0_15 = arith.constant 0 : index
    %c0_16 = arith.constant 0 : index
    %32 = vector.load %arg4[%c0_14, %c0_15, %c0_16] : memref<9x4x4xf32, #tpu.memory_space<vmem>>, vector<1x4x4xf32>
    %33 = vector.shape_cast %32 : vector<1x4x4xf32> to vector<4x4xf32>
    %cst_17 = arith.constant dense<0.000000e+00> : vector<4x64xf32>
    %34 = tpu.matmul %33, %31, %cst_17 {dimension_numbers = #tpu.dot_dimension_numbers<[1], [0], [0], [1], [0, 0, 1, 1], [], []>} : vector<4x4xf32>, vector<4x64xf32>, vector<4x64xf32> -> vector<4x64xf32>
    %35 = vector.broadcast %30 : vector<4x1xf32> to vector<4x64xf32>
    %36 = arith.addf %35, %34 : vector<4x64xf32>
    %c0_18 = arith.constant 0 : index
    %c8 = arith.constant 8 : index
    %37 = vector.load %arg12[%c0_18, %c8] : memref<4x80xf32, #tpu.memory_space<vmem>>, vector<4x64xf32>
    %c1 = arith.constant 1 : index
    %c0_19 = arith.constant 0 : index
    %c0_20 = arith.constant 0 : index
    %38 = vector.load %arg4[%c1, %c0_19, %c0_20] : memref<9x4x4xf32, #tpu.memory_space<vmem>>, vector<1x4x4xf32>
    %39 = vector.shape_cast %38 : vector<1x4x4xf32> to vector<4x4xf32>
    %cst_21 = arith.constant dense<0.000000e+00> : vector<4x64xf32>
    %40 = tpu.matmul %39, %37, %cst_21 {dimension_numbers = #tpu.dot_dimension_numbers<[1], [0], [0], [1], [0, 0, 1, 1], [], []>} : vector<4x4xf32>, vector<4x64xf32>, vector<4x64xf32> -> vector<4x64xf32>
    %41 = arith.addf %36, %40 : vector<4x64xf32>
    %c0_22 = arith.constant 0 : index
    %c9 = arith.constant 9 : index
    %42 = vector.load %arg12[%c0_22, %c9] : memref<4x80xf32, #tpu.memory_space<vmem>>, vector<4x64xf32>
    %c2 = arith.constant 2 : index
    %c0_23 = arith.constant 0 : index
    %c0_24 = arith.constant 0 : index
    %43 = vector.load %arg4[%c2, %c0_23, %c0_24] : memref<9x4x4xf32, #tpu.memory_space<vmem>>, vector<1x4x4xf32>
    %44 = vector.shape_cast %43 : vector<1x4x4xf32> to vector<4x4xf32>
    %cst_25 = arith.constant dense<0.000000e+00> : vector<4x64xf32>
    %45 = tpu.matmul %44, %42, %cst_25 {dimension_numbers = #tpu.dot_dimension_numbers<[1], [0], [0], [1], [0, 0, 1, 1], [], []>} : vector<4x4xf32>, vector<4x64xf32>, vector<4x64xf32> -> vector<4x64xf32>
    %46 = arith.addf %41, %45 : vector<4x64xf32>
    %cst_26 = arith.constant -3.000000e+01 : f32
    %47 = vector.broadcast %cst_26 : f32 to vector<4x64xf32>
    %48 = arith.maximumf %46, %47 : vector<4x64xf32>
    %cst_27 = arith.constant 0.000000e+00 : f32
    %49 = vector.broadcast %cst_27 : f32 to vector<4x64xf32>
    %50 = arith.subf %49, %48 : vector<4x64xf32>
    %51 = math.exp %50 : vector<4x64xf32>
    %cst_28 = arith.constant 1.000000e+00 : f32
    %52 = vector.broadcast %cst_28 : f32 to vector<4x64xf32>
    %53 = arith.subf %52, %51 : vector<4x64xf32>
    %54 = arith.mulf %51, %51 : vector<4x64xf32>
    %cst_29 = arith.constant 1.000000e+00 : f32
    %55 = vector.broadcast %cst_29 : f32 to vector<4x64xf32>
    %56 = arith.addf %55, %54 : vector<4x64xf32>
    %57 = tpu.reciprocal %56 {approx = true} : vector<4x64xf32> -> vector<4x64xf32>
    %58 = arith.mulf %53, %57 : vector<4x64xf32>
    %c0_30 = arith.constant 0 : index
    %c0_31 = arith.constant 0 : index
    %c0_32 = arith.constant 0 : index
    %59 = vector.load %arg6[%c0_30, %c0_31, %c0_32] : memref<3x4x1xf32, #tpu.memory_space<vmem>>, vector<1x4x1xf32>
    %60 = vector.shape_cast %59 : vector<1x4x1xf32> to vector<4x1xf32>
    %61 = vector.broadcast %60 : vector<4x1xf32> to vector<4x64xf32>
    %62 = arith.mulf %61, %58 : vector<4x64xf32>
    %cst_33 = arith.constant dense<0.000000e+00> : vector<64xf32>
    %63 = vector.multi_reduction <add>, %62, %cst_33 [0] : vector<4x64xf32> to vector<64xf32>
    %64 = vector.shape_cast %63 : vector<64xf32> to vector<1x64xf32>
    %c0_34 = arith.constant 0 : index
    %65 = memref.load %arg7[%c0_34] : memref<3xf32, #tpu.memory_space<smem>>
    %66 = vector.broadcast %65 : f32 to vector<1x64xf32>
    %67 = arith.addf %64, %66 : vector<1x64xf32>
    %68 = arith.mulf %67, %15 : vector<1x64xf32>
    %c0_35 = arith.constant 0 : index
    %c8_36 = arith.constant 8 : index
    %69 = vector.load %arg12[%c0_35, %c8_36] : memref<4x80xf32, #tpu.memory_space<vmem>>, vector<4x64xf32>
    %70 = vector.broadcast %68 : vector<1x64xf32> to vector<4x64xf32>
    %71 = arith.addf %69, %70 : vector<4x64xf32>
    %c0_37 = arith.constant 0 : index
    %c8_38 = arith.constant 8 : index
    %72 = vector.load %arg12[%c0_37, %c8_38] : memref<4x80xf32, #tpu.memory_space<vmem>>, vector<4x64xf32>
    tpu.vector_store %arg12[%c0_37, %c8_38], %71 {strides = array<i32>} : memref<4x80xf32, #tpu.memory_space<vmem>>, vector<4x64xf32>,
    %73 = arith.addf %28, %68 : vector<1x64xf32>
    %c1_39 = arith.constant 1 : index
    %c0_40 = arith.constant 0 : index
    %c0_41 = arith.constant 0 : index
    %74 = vector.load %arg5[%c1_39, %c0_40, %c0_41] : memref<3x4x1xf32, #tpu.memory_space<vmem>>, vector<1x4x1xf32>
    %75 = vector.shape_cast %74 : vector<1x4x1xf32> to vector<4x1xf32>
    %c0_42 = arith.constant 0 : index
    %c6 = arith.constant 6 : index
    %76 = vector.load %arg12[%c0_42, %c6] : memref<4x80xf32, #tpu.memory_space<vmem>>, vector<4x64xf32>
    %c3 = arith.constant 3 : index
    %c0_43 = arith.constant 0 : index
    %c0_44 = arith.constant 0 : index
    %77 = vector.load %arg4[%c3, %c0_43, %c0_44] : memref<9x4x4xf32, #tpu.memory_space<vmem>>, vector<1x4x4xf32>
    %78 = vector.shape_cast %77 : vector<1x4x4xf32> to vector<4x4xf32>
    %cst_45 = arith.constant dense<0.000000e+00> : vector<4x64xf32>
    %79 = tpu.matmul %78, %76, %cst_45 {dimension_numbers = #tpu.dot_dimension_numbers<[1], [0], [0], [1], [0, 0, 1, 1], [], []>} : vector<4x4xf32>, vector<4x64xf32>, vector<4x64xf32> -> vector<4x64xf32>
    %80 = vector.broadcast %75 : vector<4x1xf32> to vector<4x64xf32>
    %81 = arith.addf %80, %79 : vector<4x64xf32>
    %c0_46 = arith.constant 0 : index
    %c8_47 = arith.constant 8 : index
    %82 = vector.load %arg12[%c0_46, %c8_47] : memref<4x80xf32, #tpu.memory_space<vmem>>, vector<4x64xf32>
    %c4 = arith.constant 4 : index
    %c0_48 = arith.constant 0 : index
    %c0_49 = arith.constant 0 : index
    %83 = vector.load %arg4[%c4, %c0_48, %c0_49] : memref<9x4x4xf32, #tpu.memory_space<vmem>>, vector<1x4x4xf32>
    %84 = vector.shape_cast %83 : vector<1x4x4xf32> to vector<4x4xf32>
    %cst_50 = arith.constant dense<0.000000e+00> : vector<4x64xf32>
    %85 = tpu.matmul %84, %82, %cst_50 {dimension_numbers = #tpu.dot_dimension_numbers<[1], [0], [0], [1], [0, 0, 1, 1], [], []>} : vector<4x4xf32>, vector<4x64xf32>, vector<4x64xf32> -> vector<4x64xf32>
    %86 = arith.addf %81, %85 : vector<4x64xf32>
    %c0_51 = arith.constant 0 : index
    %c10 = arith.constant 10 : index
    %87 = vector.load %arg12[%c0_51, %c10] : memref<4x80xf32, #tpu.memory_space<vmem>>, vector<4x64xf32>
    %c5 = arith.constant 5 : index
    %c0_52 = arith.constant 0 : index
    %c0_53 = arith.constant 0 : index
    %88 = vector.load %arg4[%c5, %c0_52, %c0_53] : memref<9x4x4xf32, #tpu.memory_space<vmem>>, vector<1x4x4xf32>
    %89 = vector.shape_cast %88 : vector<1x4x4xf32> to vector<4x4xf32>
    %cst_54 = arith.constant dense<0.000000e+00> : vector<4x64xf32>
    %90 = tpu.matmul %89, %87, %cst_54 {dimension_numbers = #tpu.dot_dimension_numbers<[1], [0], [0], [1], [0, 0, 1, 1], [], []>} : vector<4x4xf32>, vector<4x64xf32>, vector<4x64xf32> -> vector<4x64xf32>
    %91 = arith.addf %86, %90 : vector<4x64xf32>
    %cst_55 = arith.constant -3.000000e+01 : f32
    %92 = vector.broadcast %cst_55 : f32 to vector<4x64xf32>
    %93 = arith.maximumf %91, %92 : vector<4x64xf32>
    %cst_56 = arith.constant 0.000000e+00 : f32
    %94 = vector.broadcast %cst_56 : f32 to vector<4x64xf32>
    %95 = arith.subf %94, %93 : vector<4x64xf32>
    %96 = math.exp %95 : vector<4x64xf32>
    %cst_57 = arith.constant 1.000000e+00 : f32
    %97 = vector.broadcast %cst_57 : f32 to vector<4x64xf32>
    %98 = arith.subf %97, %96 : vector<4x64xf32>
    %99 = arith.mulf %96, %96 : vector<4x64xf32>
    %cst_58 = arith.constant 1.000000e+00 : f32
    %100 = vector.broadcast %cst_58 : f32 to vector<4x64xf32>
    %101 = arith.addf %100, %99 : vector<4x64xf32>
    %102 = tpu.reciprocal %101 {approx = true} : vector<4x64xf32> -> vector<4x64xf32>
    %103 = arith.mulf %98, %102 : vector<4x64xf32>
    %c1_59 = arith.constant 1 : index
    %c0_60 = arith.constant 0 : index
    %c0_61 = arith.constant 0 : index
    %104 = vector.load %arg6[%c1_59, %c0_60, %c0_61] : memref<3x4x1xf32, #tpu.memory_space<vmem>>, vector<1x4x1xf32>
    %105 = vector.shape_cast %104 : vector<1x4x1xf32> to vector<4x1xf32>
    %106 = vector.broadcast %105 : vector<4x1xf32> to vector<4x64xf32>
    %107 = arith.mulf %106, %103 : vector<4x64xf32>
    %cst_62 = arith.constant dense<0.000000e+00> : vector<64xf32>
    %108 = vector.multi_reduction <add>, %107, %cst_62 [0] : vector<4x64xf32> to vector<64xf32>
    %109 = vector.shape_cast %108 : vector<64xf32> to vector<1x64xf32>
    %c1_63 = arith.constant 1 : index
    %110 = memref.load %arg7[%c1_63] : memref<3xf32, #tpu.memory_space<smem>>
    %111 = vector.broadcast %110 : f32 to vector<1x64xf32>
    %112 = arith.addf %109, %111 : vector<1x64xf32>
    %113 = arith.mulf %112, %15 : vector<1x64xf32>
    %c0_64 = arith.constant 0 : index
    %c8_65 = arith.constant 8 : index
    %114 = vector.load %arg12[%c0_64, %c8_65] : memref<4x80xf32, #tpu.memory_space<vmem>>, vector<4x64xf32>
    %115 = vector.broadcast %113 : vector<1x64xf32> to vector<4x64xf32>
    %116 = arith.addf %114, %115 : vector<4x64xf32>
    %c0_66 = arith.constant 0 : index
    %c8_67 = arith.constant 8 : index
    %117 = vector.load %arg12[%c0_66, %c8_67] : memref<4x80xf32, #tpu.memory_space<vmem>>, vector<4x64xf32>
    tpu.vector_store %arg12[%c0_66, %c8_67], %116 {strides = array<i32>} : memref<4x80xf32, #tpu.memory_space<vmem>>, vector<4x64xf32>,
    %118 = arith.addf %73, %113 : vector<1x64xf32>
    %c2_68 = arith.constant 2 : index
    %c0_69 = arith.constant 0 : index
    %c0_70 = arith.constant 0 : index
    %119 = vector.load %arg5[%c2_68, %c0_69, %c0_70] : memref<3x4x1xf32, #tpu.memory_space<vmem>>, vector<1x4x1xf32>
    %120 = vector.shape_cast %119 : vector<1x4x1xf32> to vector<4x1xf32>
    %c0_71 = arith.constant 0 : index
    %c4_72 = arith.constant 4 : index
    %121 = vector.load %arg12[%c0_71, %c4_72] : memref<4x80xf32, #tpu.memory_space<vmem>>, vector<4x64xf32>
    %c6_73 = arith.constant 6 : index
    %c0_74 = arith.constant 0 : index
    %c0_75 = arith.constant 0 : index
    %122 = vector.load %arg4[%c6_73, %c0_74, %c0_75] : memref<9x4x4xf32, #tpu.memory_space<vmem>>, vector<1x4x4xf32>
    %123 = vector.shape_cast %122 : vector<1x4x4xf32> to vector<4x4xf32>
    %cst_76 = arith.constant dense<0.000000e+00> : vector<4x64xf32>
    %124 = tpu.matmul %123, %121, %cst_76 {dimension_numbers = #tpu.dot_dimension_numbers<[1], [0], [0], [1], [0, 0, 1, 1], [], []>} : vector<4x4xf32>, vector<4x64xf32>, vector<4x64xf32> -> vector<4x64xf32>
    %125 = vector.broadcast %120 : vector<4x1xf32> to vector<4x64xf32>
    %126 = arith.addf %125, %124 : vector<4x64xf32>
    %c0_77 = arith.constant 0 : index
    %c8_78 = arith.constant 8 : index
    %127 = vector.load %arg12[%c0_77, %c8_78] : memref<4x80xf32, #tpu.memory_space<vmem>>, vector<4x64xf32>
    %c7_79 = arith.constant 7 : index
    %c0_80 = arith.constant 0 : index
    %c0_81 = arith.constant 0 : index
    %128 = vector.load %arg4[%c7_79, %c0_80, %c0_81] : memref<9x4x4xf32, #tpu.memory_space<vmem>>, vector<1x4x4xf32>
    %129 = vector.shape_cast %128 : vector<1x4x4xf32> to vector<4x4xf32>
    %cst_82 = arith.constant dense<0.000000e+00> : vector<4x64xf32>
    %130 = tpu.matmul %129, %127, %cst_82 {dimension_numbers = #tpu.dot_dimension_numbers<[1], [0], [0], [1], [0, 0, 1, 1], [], []>} : vector<4x4xf32>, vector<4x64xf32>, vector<4x64xf32> -> vector<4x64xf32>
    %131 = arith.addf %126, %130 : vector<4x64xf32>
    %c0_83 = arith.constant 0 : index
    %c12 = arith.constant 12 : index
    %132 = vector.load %arg12[%c0_83, %c12] : memref<4x80xf32, #tpu.memory_space<vmem>>, vector<4x64xf32>
    %c8_84 = arith.constant 8 : index
    %c0_85 = arith.constant 0 : index
    %c0_86 = arith.constant 0 : index
    %133 = vector.load %arg4[%c8_84, %c0_85, %c0_86] : memref<9x4x4xf32, #tpu.memory_space<vmem>>, vector<1x4x4xf32>
    %134 = vector.shape_cast %133 : vector<1x4x4xf32> to vector<4x4xf32>
    %cst_87 = arith.constant dense<0.000000e+00> : vector<4x64xf32>
    %135 = tpu.matmul %134, %132, %cst_87 {dimension_numbers = #tpu.dot_dimension_numbers<[1], [0], [0], [1], [0, 0, 1, 1], [], []>} : vector<4x4xf32>, vector<4x64xf32>, vector<4x64xf32> -> vector<4x64xf32>
    %136 = arith.addf %131, %135 : vector<4x64xf32>
    %cst_88 = arith.constant -3.000000e+01 : f32
    %137 = vector.broadcast %cst_88 : f32 to vector<4x64xf32>
    %138 = arith.maximumf %136, %137 : vector<4x64xf32>
    %cst_89 = arith.constant 0.000000e+00 : f32
    %139 = vector.broadcast %cst_89 : f32 to vector<4x64xf32>
    %140 = arith.subf %139, %138 : vector<4x64xf32>
    %141 = math.exp %140 : vector<4x64xf32>
    %cst_90 = arith.constant 1.000000e+00 : f32
    %142 = vector.broadcast %cst_90 : f32 to vector<4x64xf32>
    %143 = arith.subf %142, %141 : vector<4x64xf32>
    %144 = arith.mulf %141, %141 : vector<4x64xf32>
    %cst_91 = arith.constant 1.000000e+00 : f32
    %145 = vector.broadcast %cst_91 : f32 to vector<4x64xf32>
    %146 = arith.addf %145, %144 : vector<4x64xf32>
    %147 = tpu.reciprocal %146 {approx = true} : vector<4x64xf32> -> vector<4x64xf32>
    %148 = arith.mulf %143, %147 : vector<4x64xf32>
    %c2_92 = arith.constant 2 : index
    %c0_93 = arith.constant 0 : index
    %c0_94 = arith.constant 0 : index
    %149 = vector.load %arg6[%c2_92, %c0_93, %c0_94] : memref<3x4x1xf32, #tpu.memory_space<vmem>>, vector<1x4x1xf32>
    %150 = vector.shape_cast %149 : vector<1x4x1xf32> to vector<4x1xf32>
    %151 = vector.broadcast %150 : vector<4x1xf32> to vector<4x64xf32>
    %152 = arith.mulf %151, %148 : vector<4x64xf32>
    %cst_95 = arith.constant dense<0.000000e+00> : vector<64xf32>
    %153 = vector.multi_reduction <add>, %152, %cst_95 [0] : vector<4x64xf32> to vector<64xf32>
    %154 = vector.shape_cast %153 : vector<64xf32> to vector<1x64xf32>
    %c2_96 = arith.constant 2 : index
    %155 = memref.load %arg7[%c2_96] : memref<3xf32, #tpu.memory_space<smem>>
    %156 = vector.broadcast %155 : f32 to vector<1x64xf32>
    %157 = arith.addf %154, %156 : vector<1x64xf32>
    %158 = arith.mulf %157, %15 : vector<1x64xf32>
    %c0_97 = arith.constant 0 : index
    %c8_98 = arith.constant 8 : index
    %159 = vector.load %arg12[%c0_97, %c8_98] : memref<4x80xf32, #tpu.memory_space<vmem>>, vector<4x64xf32>
    %160 = vector.broadcast %158 : vector<1x64xf32> to vector<4x64xf32>
    %161 = arith.addf %159, %160 : vector<4x64xf32>
    %c0_99 = arith.constant 0 : index
    %c8_100 = arith.constant 8 : index
    %162 = vector.load %arg12[%c0_99, %c8_100] : memref<4x80xf32, #tpu.memory_space<vmem>>, vector<4x64xf32>
    tpu.vector_store %arg12[%c0_99, %c8_100], %161 {strides = array<i32>} : memref<4x80xf32, #tpu.memory_space<vmem>>, vector<4x64xf32>,
    %163 = arith.addf %118, %158 : vector<1x64xf32>
    %c0_101 = arith.constant 0 : index
    %164 = memref.load %arg8[%c0_101] : memref<4xf32, #tpu.memory_space<smem>>
    %c1_102 = arith.constant 1 : index
    %165 = memref.load %arg8[%c1_102] : memref<4xf32, #tpu.memory_space<smem>>
    %c2_103 = arith.constant 2 : index
    %166 = memref.load %arg8[%c2_103] : memref<4xf32, #tpu.memory_space<smem>>
    %c3_104 = arith.constant 3 : index
    %167 = memref.load %arg8[%c3_104] : memref<4xf32, #tpu.memory_space<smem>>
    %cst_105 = arith.constant 0.000000e+00 : f32
    %168 = vector.broadcast %cst_105 : f32 to vector<1x64xf32>
    %169 = arith.maximumf %163, %168 : vector<1x64xf32>
    %170 = vector.broadcast %164 : f32 to vector<1x64xf32>
    %171 = arith.mulf %170, %169 : vector<1x64xf32>
    %172 = vector.broadcast %165 : f32 to vector<1x64xf32>
    %173 = arith.addf %171, %172 : vector<1x64xf32>
    %cst_106 = arith.constant 0.000000e+00 : f32
    %174 = vector.broadcast %cst_106 : f32 to vector<1x64xf32>
    %175 = arith.maximumf %173, %174 : vector<1x64xf32>
    %176 = vector.broadcast %166 : f32 to vector<1x64xf32>
    %177 = arith.mulf %176, %175 : vector<1x64xf32>
    %178 = vector.broadcast %167 : f32 to vector<1x64xf32>
    %179 = arith.addf %177, %178 : vector<1x64xf32>
    %180 = vector.extract_strided_slice %179 {offsets = [0, 8], sizes = [1, 16], strides = [1, 1]} : vector<1x64xf32> to vector<1x16xf32>
    %c0_107 = arith.constant 0 : index
    %c0_108 = arith.constant 0 : index
    %181 = vector.load %arg13[%c0_107, %c0_108] : memref<2x16xf32, #tpu.memory_space<vmem>>, vector<1x16xf32>
    tpu.vector_store %arg13[%c0_107, %c0_108], %180 {strides = array<i32>} : memref<2x16xf32, #tpu.memory_space<vmem>>, vector<1x16xf32>,
    %182 = vector.extract_strided_slice %179 {offsets = [0, 40], sizes = [1, 16], strides = [1, 1]} : vector<1x64xf32> to vector<1x16xf32>
    %c1_109 = arith.constant 1 : index
    %c0_110 = arith.constant 0 : index
    %183 = vector.load %arg13[%c1_109, %c0_110] : memref<2x16xf32, #tpu.memory_space<vmem>>, vector<1x16xf32>
    tpu.vector_store %arg13[%c1_109, %c0_110], %182 {strides = array<i32>} : memref<2x16xf32, #tpu.memory_space<vmem>>, vector<1x16xf32>,
    %c0_111 = arith.constant 0 : index
    %c0_112 = arith.constant 0 : index
    %184 = vector.load %arg13[%c0_111, %c0_112] : memref<2x16xf32, #tpu.memory_space<vmem>>, vector<2x16xf32>
    %c0_113 = arith.constant 0 : index
    %c0_114 = arith.constant 0 : index
    %185 = vector.load %arg9[%c0_113, %c0_114] : memref<16x256xf32, #tpu.memory_space<vmem>>, vector<16x256xf32>
    %cst_115 = arith.constant dense<0.000000e+00> : vector<2x256xf32>
    %186 = tpu.matmul %184, %185, %cst_115 {dimension_numbers = #tpu.dot_dimension_numbers<[1], [0], [0], [1], [0, 0, 1, 1], [], []>} : vector<2x16xf32>, vector<16x256xf32>, vector<2x256xf32> -> vector<2x256xf32>
    %c0_116 = arith.constant 0 : index
    %c0_117 = arith.constant 0 : index
    %187 = vector.load %arg10[%c0_116, %c0_117] : memref<1x256xf32, #tpu.memory_space<vmem>>, vector<1x256xf32>
    %188 = vector.broadcast %187 : vector<1x256xf32> to vector<2x256xf32>
    %189 = arith.addf %186, %188 : vector<2x256xf32>
    %cst_118 = arith.constant dense<0xFF800000> : vector<2xf32>
    %190 = vector.multi_reduction <maximumf>, %189, %cst_118 [1] : vector<2x256xf32> to vector<2xf32>
    %191 = vector.shape_cast %190 : vector<2xf32> to vector<2x1xf32>
    %192 = vector.broadcast %191 : vector<2x1xf32> to vector<2x256xf32>
    %193 = arith.subf %189, %192 : vector<2x256xf32>
    %194 = math.exp %193 : vector<2x256xf32>
    %cst_119 = arith.constant dense<0.000000e+00> : vector<2xf32>
    %195 = vector.multi_reduction <add>, %194, %cst_119 [1] : vector<2x256xf32> to vector<2xf32>
    %196 = vector.shape_cast %195 : vector<2xf32> to vector<2x1xf32>
    %197 = vector.broadcast %196 : vector<2x1xf32> to vector<2x256xf32>
    %198 = arith.divf %194, %197 : vector<2x256xf32>
    %c0_120 = arith.constant 0 : index
    %c0_121 = arith.constant 0 : index
    %c0_122 = arith.constant 0 : index
    %199 = vector.load %arg11[%c0_120, %c0_121, %c0_122] : memref<1x2x256xf32, #tpu.memory_space<vmem>>, vector<1x2x256xf32>
    %200 = vector.shape_cast %199 : vector<1x2x256xf32> to vector<2x256xf32>
    %201 = vector.shape_cast %198 : vector<2x256xf32> to vector<1x2x256xf32>
    tpu.vector_store %arg11[%c0_120, %c0_121, %c0_122], %201 {strides = array<i32>} : memref<1x2x256xf32, #tpu.memory_space<vmem>>, vector<1x2x256xf32>,
    return
  }
  func.func @transform_0(%arg0: i32) -> (i32, i32, i32) {
    %c0_i32 = arith.constant 0 : i32
    %c0_i32_0 = arith.constant 0 : i32
    %c0_i32_1 = arith.constant 0 : i32
    return %arg0, %c0_i32, %c0_i32_0 : i32, i32, i32
  }
  func.func @transform_1(%arg0: i32) -> (i32, i32) {
    %c0_i32 = arith.constant 0 : i32
    %c0_i32_0 = arith.constant 0 : i32
    %c0_i32_1 = arith.constant 0 : i32
    return %c0_i32, %c0_i32_0 : i32, i32
  }
  func.func @transform_2(%arg0: i32) -> (i32, i32) {
    %c0_i32 = arith.constant 0 : i32
    %c0_i32_0 = arith.constant 0 : i32
    %c0_i32_1 = arith.constant 0 : i32
    return %c0_i32, %c0_i32_0 : i32, i32
  }
  func.func @transform_3(%arg0: i32) -> (i32, i32, i32) {
    %c0_i32 = arith.constant 0 : i32
    %c0_i32_0 = arith.constant 0 : i32
    %c0_i32_1 = arith.constant 0 : i32
    %c0_i32_2 = arith.constant 0 : i32
    return %c0_i32, %c0_i32_0, %c0_i32_1 : i32, i32, i32
  }
  func.func @transform_4(%arg0: i32) -> (i32, i32, i32) {
    %c0_i32 = arith.constant 0 : i32
    %c0_i32_0 = arith.constant 0 : i32
    %c0_i32_1 = arith.constant 0 : i32
    %c0_i32_2 = arith.constant 0 : i32
    return %c0_i32, %c0_i32_0, %c0_i32_1 : i32, i32, i32
  }
  func.func @transform_5(%arg0: i32) -> (i32, i32, i32) {
    %c0_i32 = arith.constant 0 : i32
    %c0_i32_0 = arith.constant 0 : i32
    %c0_i32_1 = arith.constant 0 : i32
    %c0_i32_2 = arith.constant 0 : i32
    return %c0_i32, %c0_i32_0, %c0_i32_1 : i32, i32, i32
  }
  func.func @transform_6(%arg0: i32) -> i32 {
    %c0_i32 = arith.constant 0 : i32
    %c0_i32_0 = arith.constant 0 : i32
    return %c0_i32 : i32
  }
  func.func @transform_7(%arg0: i32) -> i32 {
    %c0_i32 = arith.constant 0 : i32
    %c0_i32_0 = arith.constant 0 : i32
    return %c0_i32 : i32
  }
  func.func @transform_8(%arg0: i32) -> (i32, i32) {
    %c0_i32 = arith.constant 0 : i32
    %c0_i32_0 = arith.constant 0 : i32
    %c0_i32_1 = arith.constant 0 : i32
    return %c0_i32, %c0_i32_0 : i32, i32
  }
  func.func @transform_9(%arg0: i32) -> (i32, i32) {
    %c0_i32 = arith.constant 0 : i32
    %c0_i32_0 = arith.constant 0 : i32
    %c0_i32_1 = arith.constant 0 : i32
    return %c0_i32, %c0_i32_0 : i32, i32
  }
  func.func @transform_10(%arg0: i32) -> (i32, i32, i32) {
    %c0_i32 = arith.constant 0 : i32
    %c0_i32_0 = arith.constant 0 : i32
    %c0_i32_1 = arith.constant 0 : i32
    return %arg0, %c0_i32, %c0_i32_0 : i32, i32, i32
  }
}

</mosaic_0001>

<llo_original>
// kernel: tpu_custom_call.1
$region0: #{tpu_custom_call.1}
  #allocation0 [shape = 'u32[]', space=smem, size = 0x4, offset = 0x4, fixed_abs, tag = 'smem constant byte address 0x4 - core index']
  #allocation1 [shape = 'u32[144,128]{1,0:T(1,128)}', space=vmem, size = 0x12000, scoped, tag = 'internal scratch']
  #allocation2 [shape = 'f32[4,80]{1,0:T(4,128)}', space=vmem, size = 0x800, scoped, tag = 'scratch operand']
  #allocation3 [shape = 'f32[2,16]{1,0:T(2,128)}', space=vmem, size = 0x400, scoped, tag = 'scratch operand']
  %s0 = inlined_call_operand.vmem [shape: f32[1,1,80], index: 0, kind: input, shape index: {}]
  %s1 = inlined_call_operand.vmem [shape: f32[4,1], index: 1, kind: input, shape index: {}]
  %s2 = inlined_call_operand.vmem [shape: f32[4,1], index: 2, kind: input, shape index: {}]
  %s3 = inlined_call_operand.vmem [shape: f32[9,4,4], index: 3, kind: input, shape index: {}]
  %s4 = inlined_call_operand.vmem [shape: f32[3,4,1], index: 4, kind: input, shape index: {}]
  %s5 = inlined_call_operand.vmem [shape: f32[3,4,1], index: 5, kind: input, shape index: {}]
  %s6 = inlined_call_operand.vmem [shape: f32[3], index: 6, kind: input, shape index: {}]
  %s7 = inlined_call_operand.vmem [shape: f32[4], index: 7, kind: input, shape index: {}]
  %s8 = inlined_call_operand.vmem [shape: f32[16,256], index: 8, kind: input, shape index: {}]
  %s9 = inlined_call_operand.vmem [shape: f32[1,256], index: 9, kind: input, shape index: {}]
  %s10 = inlined_call_operand.hbm [shape: f32[1,2,256], index: 10, kind: output, shape index: {}]
  %s11 = sld [smem:[#allocation0]]
  $region58: #{tpu_custom_call.1} parent=0
    _
  %s13 = ssub.s32 1, %s11
  %s14 = scalar_select 0, %s13, %s11
  $region1: #{tpu_custom_call.1} parent=0
    #allocation4 [shape = 'u8[512]{0}', space=smem, size = 0x200, scoped, tag = 'input window, operand 6, single buffered']
    #allocation5 [shape = 's32[1]{0}', space=sflag, size = 0x4, scoped, tag = 'scoped memory for tpu_custom_call.1']
    #allocation6 [shape = 's32[1]{0}', space=sflag, size = 0x4, scoped, tag = 'scoped memory for tpu_custom_call.1']
    #allocation7 [shape = 'u8[512]{0}', space=smem, size = 0x200, scoped, tag = 'input window, operand 7, single buffered']
    #allocation8 [shape = 's32[1]{0}', space=sflag, size = 0x4, scoped, tag = 'scoped memory for tpu_custom_call.1']
    #allocation9 [shape = 'u8[2048]{0}', space=vmem, size = 0x800, scoped, tag = 'output window, operand 0, single buffered']
    %15 = vsyncpa [#allocation6], 0
    %16 = vsyncpa [#allocation8], 0
    %17 = vsyncpa [#allocation5], 0
    // Predicated region
    $region2: #{tpu_custom_call.1} parent=1 // pred_check
      _
    $region3: #{tpu_custom_call.1} parent=1 // pred_check_branch
      %19 = sbr.rel (0) target = $region5
    $region4: #{tpu_custom_call.1} parent=1 // pred_region
      _
    $region5: #{tpu_custom_call.1} parent=1 // pred_fallthru
      _
    // Predicated region
    $region6: #{tpu_custom_call.1} parent=1 // pred_check
      _
    $region7: #{tpu_custom_call.1} parent=1 // pred_check_branch
      %21 = sbr.rel (0) target = $region9
    $region8: #{tpu_custom_call.1} parent=1 // pred_region
      _
    $region9: #{tpu_custom_call.1} parent=1 // pred_fallthru
      _
    // Predicated region
    $region10: #{tpu_custom_call.1} parent=1 // pred_check
      _
    $region11: #{tpu_custom_call.1} parent=1 // pred_check_branch
      %23 = sbr.rel (0) target = $region13
    $region12: #{tpu_custom_call.1} parent=1 // pred_region
      _
    $region13: #{tpu_custom_call.1} parent=1 // pred_fallthru
      _
    // Predicated region
    $region14: #{tpu_custom_call.1} parent=1 // pred_check
      _
    $region15: #{tpu_custom_call.1} parent=1 // pred_check_branch
      %25 = sbr.rel (0) target = $region17
    $region16: #{tpu_custom_call.1} parent=1 // pred_region
      _
    $region17: #{tpu_custom_call.1} parent=1 // pred_fallthru
      _
    // Predicated region
    $region18: #{tpu_custom_call.1} parent=1 // pred_check
      _
    $region19: #{tpu_custom_call.1} parent=1 // pred_check_branch
      %27 = sbr.rel (0) target = $region21
    $region20: #{tpu_custom_call.1} parent=1 // pred_region
      _
    $region21: #{tpu_custom_call.1} parent=1 // pred_fallthru
      _
    // Predicated region
    $region22: #{tpu_custom_call.1} parent=1 // pred_check
      _
    $region23: #{tpu_custom_call.1} parent=1 // pred_check_branch
      %29 = sbr.rel (0) target = $region25
    $region24: #{tpu_custom_call.1} parent=1 // pred_region
      _
    $region25: #{tpu_custom_call.1} parent=1 // pred_fallthru
      _
    // Predicated region
    $region26: #{tpu_custom_call.1} parent=1 // pred_check
      _
    $region27: #{tpu_custom_call.1} parent=1 // pred_check_branch
      %31 = sbr.rel (0) target = $region29
    $region28: #{tpu_custom_call.1} parent=1 // pred_region
      %s33 = ssub.s32 16, 16
      %34 = vsyncadd [#allocation6], %s33
      %s36 = sshll.u32 %s6, 4
      %s37 = int_to_ptr.vmem [resolvable:$true] %s36
      %39 = dma.vmem_to_smem %s37, 16, [#allocation4], [#allocation6]
    $region29: #{tpu_custom_call.1} parent=1 // pred_fallthru
      _
    // Predicated region
    $region30: #{tpu_custom_call.1} parent=1 // pred_check
      _
    $region31: #{tpu_custom_call.1} parent=1 // pred_check_branch
      %41 = sbr.rel (0) target = $region33
    $region32: #{tpu_custom_call.1} parent=1 // pred_region
      %s43 = ssub.s32 16, 16
      %44 = vsyncadd [#allocation8], %s43
      %s46 = sshll.u32 %s7, 4
      %s47 = int_to_ptr.vmem [resolvable:$true] %s46
      %49 = dma.vmem_to_smem %s47, 16, [#allocation7], [#allocation8]
    $region33: #{tpu_custom_call.1} parent=1 // pred_fallthru
      _
    // Predicated region
    $region34: #{tpu_custom_call.1} parent=1 // pred_check
      _
    $region35: #{tpu_custom_call.1} parent=1 // pred_check_branch
      %51 = sbr.rel (0) target = $region37
    $region36: #{tpu_custom_call.1} parent=1 // pred_region
      _
    $region37: #{tpu_custom_call.1} parent=1 // pred_fallthru
      _
    // Predicated region
    $region38: #{tpu_custom_call.1} parent=1 // pred_check
      _
    $region39: #{tpu_custom_call.1} parent=1 // pred_check_branch
      %53 = sbr.rel (0) target = $region41
    $region40: #{tpu_custom_call.1} parent=1 // pred_region
      _
    $region41: #{tpu_custom_call.1} parent=1 // pred_fallthru
      _
    // Predicated region
    $region42: #{tpu_custom_call.1} parent=1 // pred_check
      _
    $region43: #{tpu_custom_call.1} parent=1 // pred_check_branch
      %55 = sbr.rel (0) target = $region45
    $region44: #{tpu_custom_call.1} parent=1 // pred_region
      %56 = dma.done [#allocation6], 16
    $region45: #{tpu_custom_call.1} parent=1 // pred_fallthru
      _
    // Predicated region
    $region46: #{tpu_custom_call.1} parent=1 // pred_check
      _
    $region47: #{tpu_custom_call.1} parent=1 // pred_check_branch
      %58 = sbr.rel (0) target = $region49
    $region48: #{tpu_custom_call.1} parent=1 // pred_region
      %59 = dma.done [#allocation8], 16
    $region49: #{tpu_custom_call.1} parent=1 // pred_fallthru
      _
    %60 = sfence
    %v61 = vlaneseq
    %v62 = vand.u32 %v61, 127
    %vm63 = vcmp.ge.s32.totalorder %v62, 16
    %vm64 = vcmp.lt.s32.totalorder %v62, 32
    %vm65 = vmand %vm63, %vm64
    %vm66 = vcmp.ge.s32.totalorder %v62, 48
    %vm67 = vcmp.lt.s32.totalorder %v62, 64
    %vm68 = vmand %vm66, %vm67
    %vm69 = vmor %vm65, %vm68
    %v70 = vsel %vm69, 1.0, 0.0
    %v71 = vld [vmem:[%s0] sm:$0x1]
    %v72 = vld [vmem:[%s1] sm:$0xf]
    %74 = vset.pattern.permute.xlu0 0
    %75 = vperm.xlu0 %74, %v72
    %v76 = vpop.permute.xlu0 %75
    %v79 = vlaneseq
    %v80 = vshrl.u32 %v79, 7
    %v81 = vsub.s32 0, %v80
    %v82 = vrot.slane %v71, %v81
    %v84 = vmul.f32 %v76, %v82
    %v85 = vld [vmem:[%s2] sm:$0xf]
    %87 = vset.pattern.permute.xlu0 0
    %88 = vperm.xlu0 %87, %v85
    %v89 = vpop.permute.xlu0 %88
    %v91 = vadd.f32 %v84, %v89
    %v92 = vmul.f32 %v91, %v70
    %vm93 = vcmask 650240
    %94 = vst.msk [vmem:[#allocation2] sm:$0xf] %vm93, %v92
    %v95 = vld [vmem:[%s4] sm:$0xf]
    %v96 = vld [vmem:[#allocation2] sm:$0xf]
    %v97 = vld [vmem:[%s3] sm:$0xf]
    %99 = vrot.lane.b32.xlu0 %v96, 121
    %v100 = vpop.permute.xlu0 %99
    %vm101 = vcmask 31744
    %v103 = vsel %vm101, %v97, 0
    %vm105 = vcmask 1043456
    %v106 = vsel %vm105, %v100, 0
    %108 = vmatprep.subr.mxu0 0.0
    %109 = vmatpush1.msra.mxu0 %v106
    %110 = vmatprep.subr.mxu0 0.0
    %111 = vmatpush1.msra.mxu0 0.0
    %112 = vmatprep.subr.mxu0 0.0
    %113 = vmatpush1.msra.mxu0 0.0
    %114 = vmatprep.subr.mxu0 0.0
    %115 = vmatpush1.msra.mxu0 0.0
    %116 = vmatprep.subr.mxu0 0.0
    %117 = vmatpush1.msra.mxu0 0.0
    %118 = vmatprep.subr.mxu0 0.0
    %119 = vmatpush1.msra.mxu0 0.0
    %120 = vmatprep.subr.mxu0 0.0
    %121 = vmatpush1.msra.mxu0 0.0
    %122 = vmatprep.subr.mxu0 0.0
    %123 = vmatpush1.msra.mxu0 0.0
    %124 = vmatprep.subr.mxu0 0.0
    %125 = vmatpush1.msra.mxu0 0.0
    %126 = vmatprep.subr.mxu0 0.0
    %127 = vmatpush1.msra.mxu0 0.0
    %128 = vmatprep.subr.mxu0 0.0
    %129 = vmatpush1.msra.mxu0 0.0
    %130 = vmatprep.subr.mxu0 0.0
    %131 = vmatpush1.msra.mxu0 0.0
    %132 = vmatprep.subr.mxu0 0.0
    %133 = vmatpush1.msra.mxu0 0.0
    %134 = vmatprep.subr.mxu0 0.0
    %135 = vmatpush1.msra.mxu0 0.0
    %136 = vmatprep.subr.mxu0 0.0
    %137 = vmatpush1.msra.mxu0 0.0
    %138 = vmatprep.subr.mxu0 0.0
    %139 = vmatpush1.msra.mxu0 0.0
    %140 = vmatprep.subr.mxu0 0.0
    %141 = vmatpush1.msra.mxu0 0.0
    %142 = vmatprep.subr.mxu0 0.0
    %143 = vmatpush1.msra.mxu0 0.0
    %144 = vmatprep.subr.mxu0 0.0
    %145 = vmatpush1.msra.mxu0 0.0
    %146 = vmatprep.subr.mxu0 0.0
    %147 = vmatpush1.msra.mxu0 0.0
    %148 = vmatprep.subr.mxu0 0.0
    %149 = vmatpush1.msra.mxu0 0.0
    %150 = vmatprep.subr.mxu0 0.0
    %151 = vmatpush1.msra.mxu0 0.0
    %152 = vmatprep.subr.mxu0 0.0
    %153 = vmatpush1.msra.mxu0 0.0
    %154 = vmatprep.subr.mxu0 0.0
    %155 = vmatpush1.msra.mxu0 0.0
    %156 = vmatprep.subr.mxu0 0.0
    %157 = vmatpush1.msra.mxu0 0.0
    %158 = vmatprep.subr.mxu0 0.0
    %159 = vmatpush1.msra.mxu0 0.0
    %160 = vmatprep.subr.mxu0 0.0
    %161 = vmatpush1.msra.mxu0 0.0
    %162 = vmatprep.subr.mxu0 0.0
    %163 = vmatpush1.msra.mxu0 0.0
    %164 = vmatprep.subr.mxu0 0.0
    %165 = vmatpush1.msra.mxu0 0.0
    %166 = vmatprep.subr.mxu0 0.0
    %167 = vmatpush1.msra.mxu0 0.0
    %168 = vmatprep.subr.mxu0 0.0
    %169 = vmatpush1.msra.mxu0 0.0
    %170 = vmatprep.subr.mxu0 0.0
    %171 = vmatpush1.msra.mxu0 0.0
    %172 = vmatprep.mubr.f32.mxu0 0.0
    %173 = vmatmul.mubr.f32.gmra.mrb[0].mxu0 %v103
    %v174 = vpop.f32.mrb[0].mxu0
    %v175 = vadd.f32 0.0, %v174
    %v176 = vpop.f32.mrb[0].mxu0
    %177 = vdwg.mxu0
    %179 = vset.pattern.permute.xlu0 0
    %180 = vperm.xlu0 %179, %v95
    %v181 = vpop.permute.xlu0 %180
    %v183 = vadd.f32 %v181, %v175
    %s184 = scalar_lea.vmem %s3, 4
    %v185 = vld [vmem:[%s184] sm:$0xf]
    %186 = vrot.lane.b32.xlu0 %v96, 120
    %v187 = vpop.permute.xlu0 %186
    %v189 = vsel %vm101, %v185, 0
    %v191 = vsel %vm105, %v187, 0
    %193 = vmatprep.subr.mxu0 0.0
    %194 = vmatpush1.msra.mxu0 %v191
    %195 = vmatprep.subr.mxu0 0.0
    %196 = vmatpush1.msra.mxu0 0.0
    %197 = vmatprep.subr.mxu0 0.0
    %198 = vmatpush1.msra.mxu0 0.0
    %199 = vmatprep.subr.mxu0 0.0
    %200 = vmatpush1.msra.mxu0 0.0
    %201 = vmatprep.subr.mxu0 0.0
    %202 = vmatpush1.msra.mxu0 0.0
    %203 = vmatprep.subr.mxu0 0.0
    %204 = vmatpush1.msra.mxu0 0.0
    %205 = vmatprep.subr.mxu0 0.0
    %206 = vmatpush1.msra.mxu0 0.0
    %207 = vmatprep.subr.mxu0 0.0
    %208 = vmatpush1.msra.mxu0 0.0
    %209 = vmatprep.subr.mxu0 0.0
    %210 = vmatpush1.msra.mxu0 0.0
    %211 = vmatprep.subr.mxu0 0.0
    %212 = vmatpush1.msra.mxu0 0.0
    %213 = vmatprep.subr.mxu0 0.0
    %214 = vmatpush1.msra.mxu0 0.0
    %215 = vmatprep.subr.mxu0 0.0
    %216 = vmatpush1.msra.mxu0 0.0
    %217 = vmatprep.subr.mxu0 0.0
    %218 = vmatpush1.msra.mxu0 0.0
    %219 = vmatprep.subr.mxu0 0.0
    %220 = vmatpush1.msra.mxu0 0.0
    %221 = vmatprep.subr.mxu0 0.0
    %222 = vmatpush1.msra.mxu0 0.0
    %223 = vmatprep.subr.mxu0 0.0
    %224 = vmatpush1.msra.mxu0 0.0
    %225 = vmatprep.subr.mxu0 0.0
    %226 = vmatpush1.msra.mxu0 0.0
    %227 = vmatprep.subr.mxu0 0.0
    %228 = vmatpush1.msra.mxu0 0.0
    %229 = vmatprep.subr.mxu0 0.0
    %230 = vmatpush1.msra.mxu0 0.0
    %231 = vmatprep.subr.mxu0 0.0
    %232 = vmatpush1.msra.mxu0 0.0
    %233 = vmatprep.subr.mxu0 0.0
    %234 = vmatpush1.msra.mxu0 0.0
    %235 = vmatprep.subr.mxu0 0.0
    %236 = vmatpush1.msra.mxu0 0.0
    %237 = vmatprep.subr.mxu0 0.0
    %238 = vmatpush1.msra.mxu0 0.0
    %239 = vmatprep.subr.mxu0 0.0
    %240 = vmatpush1.msra.mxu0 0.0
    %241 = vmatprep.subr.mxu0 0.0
    %242 = vmatpush1.msra.mxu0 0.0
    %243 = vmatprep.subr.mxu0 0.0
    %244 = vmatpush1.msra.mxu0 0.0
    %245 = vmatprep.subr.mxu0 0.0
    %246 = vmatpush1.msra.mxu0 0.0
    %247 = vmatprep.subr.mxu0 0.0
    %248 = vmatpush1.msra.mxu0 0.0
    %249 = vmatprep.subr.mxu0 0.0
    %250 = vmatpush1.msra.mxu0 0.0
    %251 = vmatprep.subr.mxu0 0.0
    %252 = vmatpush1.msra.mxu0 0.0
    %253 = vmatprep.subr.mxu0 0.0
    %254 = vmatpush1.msra.mxu0 0.0
    %255 = vmatprep.subr.mxu0 0.0
    %256 = vmatpush1.msra.mxu0 0.0
    %257 = vmatprep.mubr.f32.mxu0 0.0
    %258 = vmatmul.mubr.f32.gmra.mrb[0].mxu0 %v189
    %v259 = vpop.f32.mrb[0].mxu0
    %v260 = vadd.f32 0.0, %v259
    %v261 = vpop.f32.mrb[0].mxu0
    %262 = vdwg.mxu0
    %v263 = vadd.f32 %v183, %v260
    %s264 = scalar_lea.vmem %s3, 8
    %v265 = vld [vmem:[%s264] sm:$0xf]
    %266 = vrot.lane.b32.xlu0 %v96, 119
    %v267 = vpop.permute.xlu0 %266
    %v269 = vsel %vm101, %v265, 0
    %v271 = vsel %vm105, %v267, 0
    %273 = vmatprep.subr.mxu0 0.0
    %274 = vmatpush1.msra.mxu0 %v271
    %275 = vmatprep.subr.mxu0 0.0
    %276 = vmatpush1.msra.mxu0 0.0
    %277 = vmatprep.subr.mxu0 0.0
    %278 = vmatpush1.msra.mxu0 0.0
    %279 = vmatprep.subr.mxu0 0.0
    %280 = vmatpush1.msra.mxu0 0.0
    %281 = vmatprep.subr.mxu0 0.0
    %282 = vmatpush1.msra.mxu0 0.0
    %283 = vmatprep.subr.mxu0 0.0
    %284 = vmatpush1.msra.mxu0 0.0
    %285 = vmatprep.subr.mxu0 0.0
    %286 = vmatpush1.msra.mxu0 0.0
    %287 = vmatprep.subr.mxu0 0.0
    %288 = vmatpush1.msra.mxu0 0.0
    %289 = vmatprep.subr.mxu0 0.0
    %290 = vmatpush1.msra.mxu0 0.0
    %291 = vmatprep.subr.mxu0 0.0
    %292 = vmatpush1.msra.mxu0 0.0
    %293 = vmatprep.subr.mxu0 0.0
    %294 = vmatpush1.msra.mxu0 0.0
    %295 = vmatprep.subr.mxu0 0.0
    %296 = vmatpush1.msra.mxu0 0.0
    %297 = vmatprep.subr.mxu0 0.0
    %298 = vmatpush1.msra.mxu0 0.0
    %299 = vmatprep.subr.mxu0 0.0
    %300 = vmatpush1.msra.mxu0 0.0
    %301 = vmatprep.subr.mxu0 0.0
    %302 = vmatpush1.msra.mxu0 0.0
    %303 = vmatprep.subr.mxu0 0.0
    %304 = vmatpush1.msra.mxu0 0.0
    %305 = vmatprep.subr.mxu0 0.0
    %306 = vmatpush1.msra.mxu0 0.0
    %307 = vmatprep.subr.mxu0 0.0
    %308 = vmatpush1.msra.mxu0 0.0
    %309 = vmatprep.subr.mxu0 0.0
    %310 = vmatpush1.msra.mxu0 0.0
    %311 = vmatprep.subr.mxu0 0.0
    %312 = vmatpush1.msra.mxu0 0.0
    %313 = vmatprep.subr.mxu0 0.0
    %314 = vmatpush1.msra.mxu0 0.0
    %315 = vmatprep.subr.mxu0 0.0
    %316 = vmatpush1.msra.mxu0 0.0
    %317 = vmatprep.subr.mxu0 0.0
    %318 = vmatpush1.msra.mxu0 0.0
    %319 = vmatprep.subr.mxu0 0.0
    %320 = vmatpush1.msra.mxu0 0.0
    %321 = vmatprep.subr.mxu0 0.0
    %322 = vmatpush1.msra.mxu0 0.0
    %323 = vmatprep.subr.mxu0 0.0
    %324 = vmatpush1.msra.mxu0 0.0
    %325 = vmatprep.subr.mxu0 0.0
    %326 = vmatpush1.msra.mxu0 0.0
    %327 = vmatprep.subr.mxu0 0.0
    %328 = vmatpush1.msra.mxu0 0.0
    %329 = vmatprep.subr.mxu0 0.0
    %330 = vmatpush1.msra.mxu0 0.0
    %331 = vmatprep.subr.mxu0 0.0
    %332 = vmatpush1.msra.mxu0 0.0
    %333 = vmatprep.subr.mxu0 0.0
    %334 = vmatpush1.msra.mxu0 0.0
    %335 = vmatprep.subr.mxu0 0.0
    %336 = vmatpush1.msra.mxu0 0.0
    %337 = vmatprep.mubr.f32.mxu0 0.0
    %338 = vmatmul.mubr.f32.gmra.mrb[0].mxu0 %v269
    %v339 = vpop.f32.mrb[0].mxu0
    %v340 = vadd.f32 0.0, %v339
    %v341 = vpop.f32.mrb[0].mxu0
    %342 = vdwg.mxu0
    %v343 = vadd.f32 %v263, %v340
    %v344 = vmax.f32 %v343, -30.0
    %v345 = vsub.f32 0.0, %v344
    %v346 = vmul.f32 %v345, 1.442695
    %v347 = vpow.pop %v346
    %v348 = vsub.f32 1.0, %v347
    %v349 = vmul.f32 %v347, %v347
    %v350 = vadd.f32 %v349, 1.0
    %v351 = vrcp.pop %v350
    %v352 = vmul.f32 %v348, %v351
    %v353 = vld [vmem:[%s5] sm:$0xf]
    %355 = vset.pattern.permute.xlu0 0
    %356 = vperm.xlu0 %355, %v353
    %v357 = vpop.permute.xlu0 %356
    %v359 = vmul.f32 %v357, %v352
    %vm360 = vcmask 519168
    %v361 = vsel %vm360, %v359, 0.0
    %v362 = vrot.slane %v361, 4
    %v363 = vadd.f32 %v361, %v362
    %v364 = vrot.slane %v363, 2
    %v365 = vadd.f32 %v363, %v364
    %v366 = vrot.slane %v365, 1
    %v367 = vadd.f32 %v365, %v366
    %s368 = sld [smem:[#allocation4]]
    %v369 = vstv %s368
    %v370 = vadd.f32 %v367, %v369
    %372 = vrot.lane.b32.xlu0 %v70, 120
    %v373 = vpop.permute.xlu0 %372
    %v375 = vmul.f32 %v370, %v373
    %v376 = vlaneseq
    %v377 = vshrl.u32 %v376, 7
    %v378 = vsub.s32 0, %v377
    %v379 = vrot.slane %v375, %v378
    %381 = vrot.lane.b32.xlu0 %v379, 8
    %v382 = vpop.permute.xlu0 %381
    %v384 = vadd.f32 %v96, %v382
    %vm385 = vcmask 584768
    %386 = vst.msk [vmem:[#allocation2] sm:$0xf] %vm385, %v384
    %v387 = vadd.f32 %v375, 0.0
    %s388 = scalar_lea.vmem %s4, 4
    %v389 = vld [vmem:[%s388] sm:$0xf]
    %v390 = vld [vmem:[#allocation2] sm:$0xf]
    %s391 = scalar_lea.vmem %s3, 12
    %v392 = vld [vmem:[%s391] sm:$0xf]
    %394 = vrot.lane.b32.xlu0 %v390, 122
    %v395 = vpop.permute.xlu0 %394
    %v397 = vsel %vm101, %v392, 0
    %v399 = vsel %vm105, %v395, 0
    %401 = vmatprep.subr.mxu0 0.0
    %402 = vmatpush1.msra.mxu0 %v399
    %403 = vmatprep.subr.mxu0 0.0
    %404 = vmatpush1.msra.mxu0 0.0
    %405 = vmatprep.subr.mxu0 0.0
    %406 = vmatpush1.msra.mxu0 0.0
    %407 = vmatprep.subr.mxu0 0.0
    %408 = vmatpush1.msra.mxu0 0.0
    %409 = vmatprep.subr.mxu0 0.0
    %410 = vmatpush1.msra.mxu0 0.0
    %411 = vmatprep.subr.mxu0 0.0
    %412 = vmatpush1.msra.mxu0 0.0
    %413 = vmatprep.subr.mxu0 0.0
    %414 = vmatpush1.msra.mxu0 0.0
    %415 = vmatprep.subr.mxu0 0.0
    %416 = vmatpush1.msra.mxu0 0.0
    %417 = vmatprep.subr.mxu0 0.0
    %418 = vmatpush1.msra.mxu0 0.0
    %419 = vmatprep.subr.mxu0 0.0
    %420 = vmatpush1.msra.mxu0 0.0
    %421 = vmatprep.subr.mxu0 0.0
    %422 = vmatpush1.msra.mxu0 0.0
    %423 = vmatprep.subr.mxu0 0.0
    %424 = vmatpush1.msra.mxu0 0.0
    %425 = vmatprep.subr.mxu0 0.0
    %426 = vmatpush1.msra.mxu0 0.0
    %427 = vmatprep.subr.mxu0 0.0
    %428 = vmatpush1.msra.mxu0 0.0
    %429 = vmatprep.subr.mxu0 0.0
    %430 = vmatpush1.msra.mxu0 0.0
    %431 = vmatprep.subr.mxu0 0.0
    %432 = vmatpush1.msra.mxu0 0.0
    %433 = vmatprep.subr.mxu0 0.0
    %434 = vmatpush1.msra.mxu0 0.0
    %435 = vmatprep.subr.mxu0 0.0
    %436 = vmatpush1.msra.mxu0 0.0
    %437 = vmatprep.subr.mxu0 0.0
    %438 = vmatpush1.msra.mxu0 0.0
    %439 = vmatprep.subr.mxu0 0.0
    %440 = vmatpush1.msra.mxu0 0.0
    %441 = vmatprep.subr.mxu0 0.0
    %442 = vmatpush1.msra.mxu0 0.0
    %443 = vmatprep.subr.mxu0 0.0
    %444 = vmatpush1.msra.mxu0 0.0
    %445 = vmatprep.subr.mxu0 0.0
    %446 = vmatpush1.msra.mxu0 0.0
    %447 = vmatprep.subr.mxu0 0.0
    %448 = vmatpush1.msra.mxu0 0.0
    %449 = vmatprep.subr.mxu0 0.0
    %450 = vmatpush1.msra.mxu0 0.0
    %451 = vmatprep.subr.mxu0 0.0
    %452 = vmatpush1.msra.mxu0 0.0
    %453 = vmatprep.subr.mxu0 0.0
    %454 = vmatpush1.msra.mxu0 0.0
    %455 = vmatprep.subr.mxu0 0.0
    %456 = vmatpush1.msra.mxu0 0.0
    %457 = vmatprep.subr.mxu0 0.0
    %458 = vmatpush1.msra.mxu0 0.0
    %459 = vmatprep.subr.mxu0 0.0
    %460 = vmatpush1.msra.mxu0 0.0
    %461 = vmatprep.subr.mxu0 0.0
    %462 = vmatpush1.msra.mxu0 0.0
    %463 = vmatprep.subr.mxu0 0.0
    %464 = vmatpush1.msra.mxu0 0.0
    %465 = vmatprep.mubr.f32.mxu0 0.0
    %466 = vmatmul.mubr.f32.gmra.mrb[0].mxu0 %v397
    %v467 = vpop.f32.mrb[0].mxu0
    %v468 = vadd.f32 0.0, %v467
    %v469 = vpop.f32.mrb[0].mxu0
    %470 = vdwg.mxu0
    %472 = vset.pattern.permute.xlu0 0
    %473 = vperm.xlu0 %472, %v389
    %v474 = vpop.permute.xlu0 %473
    %v476 = vadd.f32 %v474, %v468
    %s477 = scalar_lea.vmem %s3, 16
    %v478 = vld [vmem:[%s477] sm:$0xf]
    %479 = vrot.lane.b32.xlu0 %v390, 120
    %v480 = vpop.permute.xlu0 %479
    %v482 = vsel %vm101, %v478, 0
    %v484 = vsel %vm105, %v480, 0
    %486 = vmatprep.subr.mxu0 0.0
    %487 = vmatpush1.msra.mxu0 %v484
    %488 = vmatprep.subr.mxu0 0.0
    %489 = vmatpush1.msra.mxu0 0.0
    %490 = vmatprep.subr.mxu0 0.0
    %491 = vmatpush1.msra.mxu0 0.0
    %492 = vmatprep.subr.mxu0 0.0
    %493 = vmatpush1.msra.mxu0 0.0
    %494 = vmatprep.subr.mxu0 0.0
    %495 = vmatpush1.msra.mxu0 0.0
    %496 = vmatprep.subr.mxu0 0.0
    %497 = vmatpush1.msra.mxu0 0.0
    %498 = vmatprep.subr.mxu0 0.0
    %499 = vmatpush1.msra.mxu0 0.0
    %500 = vmatprep.subr.mxu0 0.0
    %501 = vmatpush1.msra.mxu0 0.0
    %502 = vmatprep.subr.mxu0 0.0
    %503 = vmatpush1.msra.mxu0 0.0
    %504 = vmatprep.subr.mxu0 0.0
    %505 = vmatpush1.msra.mxu0 0.0
    %506 = vmatprep.subr.mxu0 0.0
    %507 = vmatpush1.msra.mxu0 0.0
    %508 = vmatprep.subr.mxu0 0.0
    %509 = vmatpush1.msra.mxu0 0.0
    %510 = vmatprep.subr.mxu0 0.0
    %511 = vmatpush1.msra.mxu0 0.0
    %512 = vmatprep.subr.mxu0 0.0
    %513 = vmatpush1.msra.mxu0 0.0
    %514 = vmatprep.subr.mxu0 0.0
    %515 = vmatpush1.msra.mxu0 0.0
    %516 = vmatprep.subr.mxu0 0.0
    %517 = vmatpush1.msra.mxu0 0.0
    %518 = vmatprep.subr.mxu0 0.0
    %519 = vmatpush1.msra.mxu0 0.0
    %520 = vmatprep.subr.mxu0 0.0
    %521 = vmatpush1.msra.mxu0 0.0
    %522 = vmatprep.subr.mxu0 0.0
    %523 = vmatpush1.msra.mxu0 0.0
    %524 = vmatprep.subr.mxu0 0.0
    %525 = vmatpush1.msra.mxu0 0.0
    %526 = vmatprep.subr.mxu0 0.0
    %527 = vmatpush1.msra.mxu0 0.0
    %528 = vmatprep.subr.mxu0 0.0
    %529 = vmatpush1.msra.mxu0 0.0
    %530 = vmatprep.subr.mxu0 0.0
    %531 = vmatpush1.msra.mxu0 0.0
    %532 = vmatprep.subr.mxu0 0.0
    %533 = vmatpush1.msra.mxu0 0.0
    %534 = vmatprep.subr.mxu0 0.0
    %535 = vmatpush1.msra.mxu0 0.0
    %536 = vmatprep.subr.mxu0 0.0
    %537 = vmatpush1.msra.mxu0 0.0
    %538 = vmatprep.subr.mxu0 0.0
    %539 = vmatpush1.msra.mxu0 0.0
    %540 = vmatprep.subr.mxu0 0.0
    %541 = vmatpush1.msra.mxu0 0.0
    %542 = vmatprep.subr.mxu0 0.0
    %543 = vmatpush1.msra.mxu0 0.0
    %544 = vmatprep.subr.mxu0 0.0
    %545 = vmatpush1.msra.mxu0 0.0
    %546 = vmatprep.subr.mxu0 0.0
    %547 = vmatpush1.msra.mxu0 0.0
    %548 = vmatprep.subr.mxu0 0.0
    %549 = vmatpush1.msra.mxu0 0.0
    %550 = vmatprep.mubr.f32.mxu0 0.0
    %551 = vmatmul.mubr.f32.gmra.mrb[0].mxu0 %v482
    %v552 = vpop.f32.mrb[0].mxu0
    %v553 = vadd.f32 0.0, %v552
    %v554 = vpop.f32.mrb[0].mxu0
    %555 = vdwg.mxu0
    %v556 = vadd.f32 %v476, %v553
    %s557 = scalar_lea.vmem %s3, 20
    %v558 = vld [vmem:[%s557] sm:$0xf]
    %559 = vrot.lane.b32.xlu0 %v390, 118
    %v560 = vpop.permute.xlu0 %559
    %v562 = vsel %vm101, %v558, 0
    %v564 = vsel %vm105, %v560, 0
    %566 = vmatprep.subr.mxu0 0.0
    %567 = vmatpush1.msra.mxu0 %v564
    %568 = vmatprep.subr.mxu0 0.0
    %569 = vmatpush1.msra.mxu0 0.0
    %570 = vmatprep.subr.mxu0 0.0
    %571 = vmatpush1.msra.mxu0 0.0
    %572 = vmatprep.subr.mxu0 0.0
    %573 = vmatpush1.msra.mxu0 0.0
    %574 = vmatprep.subr.mxu0 0.0
    %575 = vmatpush1.msra.mxu0 0.0
    %576 = vmatprep.subr.mxu0 0.0
    %577 = vmatpush1.msra.mxu0 0.0
    %578 = vmatprep.subr.mxu0 0.0
    %579 = vmatpush1.msra.mxu0 0.0
    %580 = vmatprep.subr.mxu0 0.0
    %581 = vmatpush1.msra.mxu0 0.0
    %582 = vmatprep.subr.mxu0 0.0
    %583 = vmatpush1.msra.mxu0 0.0
    %584 = vmatprep.subr.mxu0 0.0
    %585 = vmatpush1.msra.mxu0 0.0
    %586 = vmatprep.subr.mxu0 0.0
    %587 = vmatpush1.msra.mxu0 0.0
    %588 = vmatprep.subr.mxu0 0.0
    %589 = vmatpush1.msra.mxu0 0.0
    %590 = vmatprep.subr.mxu0 0.0
    %591 = vmatpush1.msra.mxu0 0.0
    %592 = vmatprep.subr.mxu0 0.0
    %593 = vmatpush1.msra.mxu0 0.0
    %594 = vmatprep.subr.mxu0 0.0
    %595 = vmatpush1.msra.mxu0 0.0
    %596 = vmatprep.subr.mxu0 0.0
    %597 = vmatpush1.msra.mxu0 0.0
    %598 = vmatprep.subr.mxu0 0.0
    %599 = vmatpush1.msra.mxu0 0.0
    %600 = vmatprep.subr.mxu0 0.0
    %601 = vmatpush1.msra.mxu0 0.0
    %602 = vmatprep.subr.mxu0 0.0
    %603 = vmatpush1.msra.mxu0 0.0
    %604 = vmatprep.subr.mxu0 0.0
    %605 = vmatpush1.msra.mxu0 0.0
    %606 = vmatprep.subr.mxu0 0.0
    %607 = vmatpush1.msra.mxu0 0.0
    %608 = vmatprep.subr.mxu0 0.0
    %609 = vmatpush1.msra.mxu0 0.0
    %610 = vmatprep.subr.mxu0 0.0
    %611 = vmatpush1.msra.mxu0 0.0
    %612 = vmatprep.subr.mxu0 0.0
    %613 = vmatpush1.msra.mxu0 0.0
    %614 = vmatprep.subr.mxu0 0.0
    %615 = vmatpush1.msra.mxu0 0.0
    %616 = vmatprep.subr.mxu0 0.0
    %617 = vmatpush1.msra.mxu0 0.0
    %618 = vmatprep.subr.mxu0 0.0
    %619 = vmatpush1.msra.mxu0 0.0
    %620 = vmatprep.subr.mxu0 0.0
    %621 = vmatpush1.msra.mxu0 0.0
    %622 = vmatprep.subr.mxu0 0.0
    %623 = vmatpush1.msra.mxu0 0.0
    %624 = vmatprep.subr.mxu0 0.0
    %625 = vmatpush1.msra.mxu0 0.0
    %626 = vmatprep.subr.mxu0 0.0
    %627 = vmatpush1.msra.mxu0 0.0
    %628 = vmatprep.subr.mxu0 0.0
    %629 = vmatpush1.msra.mxu0 0.0
    %630 = vmatprep.mubr.f32.mxu0 0.0
    %631 = vmatmul.mubr.f32.gmra.mrb[0].mxu0 %v562
    %v632 = vpop.f32.mrb[0].mxu0
    %v633 = vadd.f32 0.0, %v632
    %v634 = vpop.f32.mrb[0].mxu0
    %635 = vdwg.mxu0
    %v636 = vadd.f32 %v556, %v633
    %v637 = vmax.f32 %v636, -30.0
    %v638 = vsub.f32 0.0, %v637
    %v639 = vmul.f32 %v638, 1.442695
    %v640 = vpow.pop %v639
    %v641 = vsub.f32 1.0, %v640
    %v642 = vmul.f32 %v640, %v640
    %v643 = vadd.f32 %v642, 1.0
    %v644 = vrcp.pop %v643
    %v645 = vmul.f32 %v641, %v644
    %s646 = scalar_lea.vmem %s5, 4
    %v647 = vld [vmem:[%s646] sm:$0xf]
    %649 = vset.pattern.permute.xlu0 0
    %650 = vperm.xlu0 %649, %v647
    %v651 = vpop.permute.xlu0 %650
    %v653 = vmul.f32 %v651, %v645
    %v654 = vsel %vm360, %v653, 0.0
    %v655 = vrot.slane %v654, 4
    %v656 = vadd.f32 %v654, %v655
    %v657 = vrot.slane %v656, 2
    %v658 = vadd.f32 %v656, %v657
    %v659 = vrot.slane %v658, 1
    %v660 = vadd.f32 %v658, %v659
    %s661 = sld [smem:[#allocation4 + $0x1]]
    %v662 = vstv %s661
    %v663 = vadd.f32 %v660, %v662
    %v664 = vmul.f32 %v663, %v373
    %v665 = vlaneseq
    %v666 = vshrl.u32 %v665, 7
    %v667 = vsub.s32 0, %v666
    %v668 = vrot.slane %v664, %v667
    %670 = vrot.lane.b32.xlu0 %v668, 8
    %v671 = vpop.permute.xlu0 %670
    %v673 = vadd.f32 %v390, %v671
    %674 = vst.msk [vmem:[#allocation2] sm:$0xf] %vm385, %v673
    %v675 = vadd.f32 %v387, %v664
    %s676 = scalar_lea.vmem %s4, 8
    %v677 = vld [vmem:[%s676] sm:$0xf]
    %v678 = vld [vmem:[#allocation2] sm:$0xf]
    %s679 = scalar_lea.vmem %s3, 24
    %v680 = vld [vmem:[%s679] sm:$0xf]
    %682 = vrot.lane.b32.xlu0 %v678, 124
    %v683 = vpop.permute.xlu0 %682
    %v685 = vsel %vm101, %v680, 0
    %v687 = vsel %vm105, %v683, 0
    %689 = vmatprep.subr.mxu0 0.0
    %690 = vmatpush1.msra.mxu0 %v687
    %691 = vmatprep.subr.mxu0 0.0
    %692 = vmatpush1.msra.mxu0 0.0
    %693 = vmatprep.subr.mxu0 0.0
    %694 = vmatpush1.msra.mxu0 0.0
    %695 = vmatprep.subr.mxu0 0.0
    %696 = vmatpush1.msra.mxu0 0.0
    %697 = vmatprep.subr.mxu0 0.0
    %698 = vmatpush1.msra.mxu0 0.0
    %699 = vmatprep.subr.mxu0 0.0
    %700 = vmatpush1.msra.mxu0 0.0
    %701 = vmatprep.subr.mxu0 0.0
    %702 = vmatpush1.msra.mxu0 0.0
    %703 = vmatprep.subr.mxu0 0.0
    %704 = vmatpush1.msra.mxu0 0.0
    %705 = vmatprep.subr.mxu0 0.0
    %706 = vmatpush1.msra.mxu0 0.0
    %707 = vmatprep.subr.mxu0 0.0
    %708 = vmatpush1.msra.mxu0 0.0
    %709 = vmatprep.subr.mxu0 0.0
    %710 = vmatpush1.msra.mxu0 0.0
    %711 = vmatprep.subr.mxu0 0.0
    %712 = vmatpush1.msra.mxu0 0.0
    %713 = vmatprep.subr.mxu0 0.0
    %714 = vmatpush1.msra.mxu0 0.0
    %715 = vmatprep.subr.mxu0 0.0
    %716 = vmatpush1.msra.mxu0 0.0
    %717 = vmatprep.subr.mxu0 0.0
    %718 = vmatpush1.msra.mxu0 0.0
    %719 = vmatprep.subr.mxu0 0.0
    %720 = vmatpush1.msra.mxu0 0.0
    %721 = vmatprep.subr.mxu0 0.0
    %722 = vmatpush1.msra.mxu0 0.0
    %723 = vmatprep.subr.mxu0 0.0
    %724 = vmatpush1.msra.mxu0 0.0
    %725 = vmatprep.subr.mxu0 0.0
    %726 = vmatpush1.msra.mxu0 0.0
    %727 = vmatprep.subr.mxu0 0.0
    %728 = vmatpush1.msra.mxu0 0.0
    %729 = vmatprep.subr.mxu0 0.0
    %730 = vmatpush1.msra.mxu0 0.0
    %731 = vmatprep.subr.mxu0 0.0
    %732 = vmatpush1.msra.mxu0 0.0
    %733 = vmatprep.subr.mxu0 0.0
    %734 = vmatpush1.msra.mxu0 0.0
    %735 = vmatprep.subr.mxu0 0.0
    %736 = vmatpush1.msra.mxu0 0.0
    %737 = vmatprep.subr.mxu0 0.0
    %738 = vmatpush1.msra.mxu0 0.0
    %739 = vmatprep.subr.mxu0 0.0
    %740 = vmatpush1.msra.mxu0 0.0
    %741 = vmatprep.subr.mxu0 0.0
    %742 = vmatpush1.msra.mxu0 0.0
    %743 = vmatprep.subr.mxu0 0.0
    %744 = vmatpush1.msra.mxu0 0.0
    %745 = vmatprep.subr.mxu0 0.0
    %746 = vmatpush1.msra.mxu0 0.0
    %747 = vmatprep.subr.mxu0 0.0
    %748 = vmatpush1.msra.mxu0 0.0
    %749 = vmatprep.subr.mxu0 0.0
    %750 = vmatpush1.msra.mxu0 0.0
    %751 = vmatprep.subr.mxu0 0.0
    %752 = vmatpush1.msra.mxu0 0.0
    %753 = vmatprep.mubr.f32.mxu0 0.0
    %754 = vmatmul.mubr.f32.gmra.mrb[0].mxu0 %v685
    %v755 = vpop.f32.mrb[0].mxu0
    %v756 = vadd.f32 0.0, %v755
    %v757 = vpop.f32.mrb[0].mxu0
    %758 = vdwg.mxu0
    %760 = vset.pattern.permute.xlu0 0
    %761 = vperm.xlu0 %760, %v677
    %v762 = vpop.permute.xlu0 %761
    %v764 = vadd.f32 %v762, %v756
    %s765 = scalar_lea.vmem %s3, 28
    %v766 = vld [vmem:[%s765] sm:$0xf]
    %767 = vrot.lane.b32.xlu0 %v678, 120
    %v768 = vpop.permute.xlu0 %767
    %v770 = vsel %vm101, %v766, 0
    %v772 = vsel %vm105, %v768, 0
    %774 = vmatprep.subr.mxu0 0.0
    %775 = vmatpush1.msra.mxu0 %v772
    %776 = vmatprep.subr.mxu0 0.0
    %777 = vmatpush1.msra.mxu0 0.0
    %778 = vmatprep.subr.mxu0 0.0
    %779 = vmatpush1.msra.mxu0 0.0
    %780 = vmatprep.subr.mxu0 0.0
    %781 = vmatpush1.msra.mxu0 0.0
    %782 = vmatprep.subr.mxu0 0.0
    %783 = vmatpush1.msra.mxu0 0.0
    %784 = vmatprep.subr.mxu0 0.0
    %785 = vmatpush1.msra.mxu0 0.0
    %786 = vmatprep.subr.mxu0 0.0
    %787 = vmatpush1.msra.mxu0 0.0
    %788 = vmatprep.subr.mxu0 0.0
    %789 = vmatpush1.msra.mxu0 0.0
    %790 = vmatprep.subr.mxu0 0.0
    %791 = vmatpush1.msra.mxu0 0.0
    %792 = vmatprep.subr.mxu0 0.0
    %793 = vmatpush1.msra.mxu0 0.0
    %794 = vmatprep.subr.mxu0 0.0
    %795 = vmatpush1.msra.mxu0 0.0
    %796 = vmatprep.subr.mxu0 0.0
    %797 = vmatpush1.msra.mxu0 0.0
    %798 = vmatprep.subr.mxu0 0.0
    %799 = vmatpush1.msra.mxu0 0.0
    %800 = vmatprep.subr.mxu0 0.0
    %801 = vmatpush1.msra.mxu0 0.0
    %802 = vmatprep.subr.mxu0 0.0
    %803 = vmatpush1.msra.mxu0 0.0
    %804 = vmatprep.subr.mxu0 0.0
    %805 = vmatpush1.msra.mxu0 0.0
    %806 = vmatprep.subr.mxu0 0.0
    %807 = vmatpush1.msra.mxu0 0.0
    %808 = vmatprep.subr.mxu0 0.0
    %809 = vmatpush1.msra.mxu0 0.0
    %810 = vmatprep.subr.mxu0 0.0
    %811 = vmatpush1.msra.mxu0 0.0
    %812 = vmatprep.subr.mxu0 0.0
    %813 = vmatpush1.msra.mxu0 0.0
    %814 = vmatprep.subr.mxu0 0.0
    %815 = vmatpush1.msra.mxu0 0.0
    %816 = vmatprep.subr.mxu0 0.0
    %817 = vmatpush1.msra.mxu0 0.0
    %818 = vmatprep.subr.mxu0 0.0
    %819 = vmatpush1.msra.mxu0 0.0
    %820 = vmatprep.subr.mxu0 0.0
    %821 = vmatpush1.msra.mxu0 0.0
    %822 = vmatprep.subr.mxu0 0.0
    %823 = vmatpush1.msra.mxu0 0.0
    %824 = vmatprep.subr.mxu0 0.0
    %825 = vmatpush1.msra.mxu0 0.0
    %826 = vmatprep.subr.mxu0 0.0
    %827 = vmatpush1.msra.mxu0 0.0
    %828 = vmatprep.subr.mxu0 0.0
    %829 = vmatpush1.msra.mxu0 0.0
    %830 = vmatprep.subr.mxu0 0.0
    %831 = vmatpush1.msra.mxu0 0.0
    %832 = vmatprep.subr.mxu0 0.0
    %833 = vmatpush1.msra.mxu0 0.0
    %834 = vmatprep.subr.mxu0 0.0
    %835 = vmatpush1.msra.mxu0 0.0
    %836 = vmatprep.subr.mxu0 0.0
    %837 = vmatpush1.msra.mxu0 0.0
    %838 = vmatprep.mubr.f32.mxu0 0.0
    %839 = vmatmul.mubr.f32.gmra.mrb[0].mxu0 %v770
    %v840 = vpop.f32.mrb[0].mxu0
    %v841 = vadd.f32 0.0, %v840
    %v842 = vpop.f32.mrb[0].mxu0
    %843 = vdwg.mxu0
    %v844 = vadd.f32 %v764, %v841
    %s845 = scalar_lea.vmem %s3, 32
    %v846 = vld [vmem:[%s845] sm:$0xf]
    %847 = vrot.lane.b32.xlu0 %v678, 116
    %v848 = vpop.permute.xlu0 %847
    %v850 = vsel %vm101, %v846, 0
    %v852 = vsel %vm105, %v848, 0
    %854 = vmatprep.subr.mxu0 0.0
    %855 = vmatpush1.msra.mxu0 %v852
    %856 = vmatprep.subr.mxu0 0.0
    %857 = vmatpush1.msra.mxu0 0.0
    %858 = vmatprep.subr.mxu0 0.0
    %859 = vmatpush1.msra.mxu0 0.0
    %860 = vmatprep.subr.mxu0 0.0
    %861 = vmatpush1.msra.mxu0 0.0
    %862 = vmatprep.subr.mxu0 0.0
    %863 = vmatpush1.msra.mxu0 0.0
    %864 = vmatprep.subr.mxu0 0.0
    %865 = vmatpush1.msra.mxu0 0.0
    %866 = vmatprep.subr.mxu0 0.0
    %867 = vmatpush1.msra.mxu0 0.0
    %868 = vmatprep.subr.mxu0 0.0
    %869 = vmatpush1.msra.mxu0 0.0
    %870 = vmatprep.subr.mxu0 0.0
    %871 = vmatpush1.msra.mxu0 0.0
    %872 = vmatprep.subr.mxu0 0.0
    %873 = vmatpush1.msra.mxu0 0.0
    %874 = vmatprep.subr.mxu0 0.0
    %875 = vmatpush1.msra.mxu0 0.0
    %876 = vmatprep.subr.mxu0 0.0
    %877 = vmatpush1.msra.mxu0 0.0
    %878 = vmatprep.subr.mxu0 0.0
    %879 = vmatpush1.msra.mxu0 0.0
    %880 = vmatprep.subr.mxu0 0.0
    %881 = vmatpush1.msra.mxu0 0.0
    %882 = vmatprep.subr.mxu0 0.0
    %883 = vmatpush1.msra.mxu0 0.0
    %884 = vmatprep.subr.mxu0 0.0
    %885 = vmatpush1.msra.mxu0 0.0
    %886 = vmatprep.subr.mxu0 0.0
    %887 = vmatpush1.msra.mxu0 0.0
    %888 = vmatprep.subr.mxu0 0.0
    %889 = vmatpush1.msra.mxu0 0.0
    %890 = vmatprep.subr.mxu0 0.0
    %891 = vmatpush1.msra.mxu0 0.0
    %892 = vmatprep.subr.mxu0 0.0
    %893 = vmatpush1.msra.mxu0 0.0
    %894 = vmatprep.subr.mxu0 0.0
    %895 = vmatpush1.msra.mxu0 0.0
    %896 = vmatprep.subr.mxu0 0.0
    %897 = vmatpush1.msra.mxu0 0.0
    %898 = vmatprep.subr.mxu0 0.0
    %899 = vmatpush1.msra.mxu0 0.0
    %900 = vmatprep.subr.mxu0 0.0
    %901 = vmatpush1.msra.mxu0 0.0
    %902 = vmatprep.subr.mxu0 0.0
    %903 = vmatpush1.msra.mxu0 0.0
    %904 = vmatprep.subr.mxu0 0.0
    %905 = vmatpush1.msra.mxu0 0.0
    %906 = vmatprep.subr.mxu0 0.0
    %907 = vmatpush1.msra.mxu0 0.0
    %908 = vmatprep.subr.mxu0 0.0
    %909 = vmatpush1.msra.mxu0 0.0
    %910 = vmatprep.subr.mxu0 0.0
    %911 = vmatpush1.msra.mxu0 0.0
    %912 = vmatprep.subr.mxu0 0.0
    %913 = vmatpush1.msra.mxu0 0.0
    %914 = vmatprep.subr.mxu0 0.0
    %915 = vmatpush1.msra.mxu0 0.0
    %916 = vmatprep.subr.mxu0 0.0
    %917 = vmatpush1.msra.mxu0 0.0
    %918 = vmatprep.mubr.f32.mxu0 0.0
    %919 = vmatmul.mubr.f32.gmra.mrb[0].mxu0 %v850
    %v920 = vpop.f32.mrb[0].mxu0
    %v921 = vadd.f32 0.0, %v920
    %v922 = vpop.f32.mrb[0].mxu0
    %923 = vdwg.mxu0
    %v924 = vadd.f32 %v844, %v921
    %v925 = vmax.f32 %v924, -30.0
    %v926 = vsub.f32 0.0, %v925
    %v927 = vmul.f32 %v926, 1.442695
    %v928 = vpow.pop %v927
    %v929 = vsub.f32 1.0, %v928
    %v930 = vmul.f32 %v928, %v928
    %v931 = vadd.f32 %v930, 1.0
    %v932 = vrcp.pop %v931
    %v933 = vmul.f32 %v929, %v932
    %s934 = scalar_lea.vmem %s5, 8
    %v935 = vld [vmem:[%s934] sm:$0xf]
    %937 = vset.pattern.permute.xlu0 0
    %938 = vperm.xlu0 %937, %v935
    %v939 = vpop.permute.xlu0 %938
    %v941 = vmul.f32 %v939, %v933
    %v942 = vsel %vm360, %v941, 0.0
    %v943 = vrot.slane %v942, 4
    %v944 = vadd.f32 %v942, %v943
    %v945 = vrot.slane %v944, 2
    %v946 = vadd.f32 %v944, %v945
    %v947 = vrot.slane %v946, 1
    %v948 = vadd.f32 %v946, %v947
    %s949 = sld [smem:[#allocation4 + $0x2]]
    %v950 = vstv %s949
    %v951 = vadd.f32 %v948, %v950
    %v952 = vmul.f32 %v951, %v373
    %v953 = vlaneseq
    %v954 = vshrl.u32 %v953, 7
    %v955 = vsub.s32 0, %v954
    %v956 = vrot.slane %v952, %v955
    %958 = vrot.lane.b32.xlu0 %v956, 8
    %v959 = vpop.permute.xlu0 %958
    %v961 = vadd.f32 %v678, %v959
    %962 = vst.msk [vmem:[#allocation2] sm:$0xf] %vm385, %v961
    %v963 = vadd.f32 %v675, %v952
    %s964 = sld [smem:[#allocation7]]
    %s965 = sld [smem:[#allocation7 + $0x1]]
    %s966 = sld [smem:[#allocation7 + $0x2]]
    %s967 = sld [smem:[#allocation7 + $0x3]]
    %v968 = vmax.f32 %v963, 0.0
    %v969 = vstv %s964
    %v970 = vmul.f32 %v969, %v968
    %v971 = vstv %s965
    %v972 = vadd.f32 %v970, %v971
    %v973 = vmax.f32 %v972, 0.0
    %v974 = vstv %s966
    %v975 = vmul.f32 %v974, %v973
    %v976 = vstv %s967
    %v977 = vadd.f32 %v975, %v976
    %979 = vrot.lane.b32.xlu0 %v977, 120
    %v980 = vpop.permute.xlu0 %979
    %vm982 = vcmask 122880
    %983 = vst.msk [vmem:[#allocation3] sm:$0x1] %vm982, %v980
    %984 = vrot.lane.b32.xlu0 %v977, 88
    %v985 = vpop.permute.xlu0 %984
    %987 = vst.msk [vmem:[#allocation3 + $0x1] sm:$0x1] %vm982, %v985
    %v988 = vld [vmem:[#allocation3] sm:$0x3]
    %v989 = vld [vmem:[%s8] sm:$0xff]
    %v990 = vld [vmem:[%s8 + $0x8] sm:$0xff]
    %v991 = vld [vmem:[%s8 + $0x10] sm:$0xff]
    %v992 = vld [vmem:[%s8 + $0x18] sm:$0xff]
    %v993 = vld [vmem:[%s9] sm:$0x3]
    %v995 = vlaneseq
    %v996 = vshrl.u32 %v995, 7
    %v997 = vsub.s32 0, %v996
    %v998 = vrot.slane %v993, %v997
    %v999 = vlaneseq
    %v1000 = vshrl.u32 %v999, 7
    %v1001 = vsub.s32 1, %v1000
    %v1002 = vrot.slane %v993, %v1001
    %vm1005 = vcmask 130048
    %v1007 = vsel %vm1005, %v988, 0
    %1009 = vmatprep.subr.mxu0 %v990
    %1010 = vmatpush1.msra.mxu0 %v989
    %1011 = vmatprep.subr.mxu0 %v992
    %1012 = vmatpush1.msra.mxu0 %v991
    %1013 = vmatprep.subr.mxu0 0.0
    %1014 = vmatpush1.msra.mxu0 0.0
    %1015 = vmatprep.subr.mxu0 0.0
    %1016 = vmatpush1.msra.mxu0 0.0
    %1017 = vmatprep.subr.mxu0 0.0
    %1018 = vmatpush1.msra.mxu0 0.0
    %1019 = vmatprep.subr.mxu0 0.0
    %1020 = vmatpush1.msra.mxu0 0.0
    %1021 = vmatprep.subr.mxu0 0.0
    %1022 = vmatpush1.msra.mxu0 0.0
    %1023 = vmatprep.subr.mxu0 0.0
    %1024 = vmatpush1.msra.mxu0 0.0
    %1025 = vmatprep.subr.mxu0 0.0
    %1026 = vmatpush1.msra.mxu0 0.0
    %1027 = vmatprep.subr.mxu0 0.0
    %1028 = vmatpush1.msra.mxu0 0.0
    %1029 = vmatprep.subr.mxu0 0.0
    %1030 = vmatpush1.msra.mxu0 0.0
    %1031 = vmatprep.subr.mxu0 0.0
    %1032 = vmatpush1.msra.mxu0 0.0
    %1033 = vmatprep.subr.mxu0 0.0
    %1034 = vmatpush1.msra.mxu0 0.0
    %1035 = vmatprep.subr.mxu0 0.0
    %1036 = vmatpush1.msra.mxu0 0.0
    %1037 = vmatprep.subr.mxu0 0.0
    %1038 = vmatpush1.msra.mxu0 0.0
    %1039 = vmatprep.subr.mxu0 0.0
    %1040 = vmatpush1.msra.mxu0 0.0
    %1041 = vmatprep.subr.mxu0 0.0
    %1042 = vmatpush1.msra.mxu0 0.0
    %1043 = vmatprep.subr.mxu0 0.0
    %1044 = vmatpush1.msra.mxu0 0.0
    %1045 = vmatprep.subr.mxu0 0.0
    %1046 = vmatpush1.msra.mxu0 0.0
    %1047 = vmatprep.subr.mxu0 0.0
    %1048 = vmatpush1.msra.mxu0 0.0
    %1049 = vmatprep.subr.mxu0 0.0
    %1050 = vmatpush1.msra.mxu0 0.0
    %1051 = vmatprep.subr.mxu0 0.0
    %1052 = vmatpush1.msra.mxu0 0.0
    %1053 = vmatprep.subr.mxu0 0.0
    %1054 = vmatpush1.msra.mxu0 0.0
    %1055 = vmatprep.subr.mxu0 0.0
    %1056 = vmatpush1.msra.mxu0 0.0
    %1057 = vmatprep.subr.mxu0 0.0
    %1058 = vmatpush1.msra.mxu0 0.0
    %1059 = vmatprep.subr.mxu0 0.0
    %1060 = vmatpush1.msra.mxu0 0.0
    %1061 = vmatprep.subr.mxu0 0.0
    %1062 = vmatpush1.msra.mxu0 0.0
    %1063 = vmatprep.subr.mxu0 0.0
    %1064 = vmatpush1.msra.mxu0 0.0
    %1065 = vmatprep.subr.mxu0 0.0
    %1066 = vmatpush1.msra.mxu0 0.0
    %1067 = vmatprep.subr.mxu0 0.0
    %1068 = vmatpush1.msra.mxu0 0.0
    %1069 = vmatprep.subr.mxu0 0.0
    %1070 = vmatpush1.msra.mxu0 0.0
    %1071 = vmatprep.subr.mxu0 0.0
    %1072 = vmatpush1.msra.mxu0 0.0
    %1073 = vmatprep.mubr.f32.mxu0 0.0
    %1074 = vmatmul.mubr.f32.gmra.mrb[0].mxu0 %v1007
    %v1075 = vpop.f32.mrb[0].mxu0
    %v1076 = vadd.f32 %v998, %v1075
    %v1077 = vpop.f32.mrb[0].mxu0
    %v1078 = vadd.f32 %v1002, %v1077
    %1079 = vdwg.mxu0
    %vm1080 = vcmask 1041408
    %v1081 = vsel %vm1080, %v1076, -inf
    %v1082 = vsel %vm1080, %v1078, -inf
    %v1083 = vmax.f32 %v1081, %v1082
    %1084 = vmax.xlane.f32.xlu0 %v1083
    %v1085 = vpop.xlane.xlu0 %1084
    %v1086 = vsub.f32 %v1076, %v1085
    %v1087 = vsub.f32 %v1078, %v1085
    %v1088 = vmul.f32 %v1086, 1.442695
    %v1089 = vpow.pop %v1088
    %v1090 = vmul.f32 %v1087, 1.442695
    %v1091 = vpow.pop %v1090
    %v1092 = vsel %vm1080, %v1089, 0.0
    %v1093 = vsel %vm1080, %v1091, 0.0
    %v1094 = vadd.f32 %v1092, %v1093
    %1095 = vadd.xlane.f32.xlu0 %v1094
    %v1096 = vpop.xlane.xlu0 %1095
    %v1097 = vrcp.pop %v1096
    %v1098 = vmul.f32 %v1089, %v1097
    %v1099 = vmul.f32 %v1091, %v1097
    %v1102 = vcombine.low %v1098, %v1099
    %v1104 = vunpack.c.l.s4 1983009808
    %v1105 = vunpack.c.0.s8 %v1104
    %v1106 = vlaneseq
    %v1107 = vshrl.u32 %v1106, 7
    %v1108 = vsub.s32 %v1105, %v1107
    %v1109 = vrot.slane %v1102, %v1108
    %1111 = vst [vmem:[#allocation9] sm:$0xf] %v1109
    // Predicated region
    $region50: #{tpu_custom_call.1} parent=1 // pred_check
      _
    $region51: #{tpu_custom_call.1} parent=1 // pred_check_branch
      %1113 = sbr.rel (0) target = $region53
    $region52: #{tpu_custom_call.1} parent=1 // pred_region
      %s1115 = ssub.s32 64, 64
      %1116 = vsyncadd [#allocation5], %s1115
      %s1118 = sshll.u32 [#allocation9], 4
      %s1119 = int_to_ptr.vmem [resolvable:$true] %s1118
      %1121 = dma.vmem_to_hbm [thread:$0]  %s1119, 64, %s10, [#allocation5]
    $region53: #{tpu_custom_call.1} parent=1 // pred_fallthru
      _
    // Predicated region
    $region54: #{tpu_custom_call.1} parent=1 // pred_check
      _
    $region55: #{tpu_custom_call.1} parent=1 // pred_check_branch
      %1123 = sbr.rel (0) target = $region57
    $region56: #{tpu_custom_call.1} parent=1 // pred_region
      %1124 = dma.done [#allocation5], 64
    $region57: #{tpu_custom_call.1} parent=1 // pred_fallthru
      _
    %1125 = vsyncpa [#allocation5], 1
    %1126 = vsyncpa [#allocation6], 1
    %1127 = vsyncpa [#allocation8], 1

</llo_original>
